<compile_context>
chip_gen: v6e
topology: v6e:2x2x1
jax: 0.10.0
libtpu: 0.0.40
codegen_flags: <defaults>
</compile_context>

<pallas_src>
import functools

import jax
import jax.numpy as jnp
from jax.experimental import pallas as pl
from jax.experimental.pallas import tpu as pltpu

_LANE = 128          # TPU lane width
_FEAT = 1024         # layer-3 output channels
_CHUNK = 256         # layer-3 output-channel chunk (1024 = 4 * 256)


def _point_mlp_kernel(x_ref, w1_ref, b1_ref, w2_ref, b2_ref, w3_ref, o_ref):
    """One (batch, point-tile) step: 3-layer point MLP + running max-pool.

    x_ref : (1, tile_n, dim)  bf16 point tile (point-major, channels on lanes)
    w1/w2 : (C_in, 128)       bf16 weights, BN scale folded, lane-padded
    w3    : (128, 1024)       bf16 weights, BN scale folded
    b1/b2 : (1, 128)          f32 folded BN shifts (layer-3 shift is deferred)
    o_ref : (1, 1, 1024)      f32 pooled raw layer-3 max; resident across the
                              point axis (bias/ReLU/dense head applied outside)
    """
    i = pl.program_id(1)

    @pl.when(i == 0)
    def _():
        o_ref[...] = jnp.full(o_ref.shape, -jnp.inf, dtype=o_ref.dtype)

    x = x_ref[0]                                                      # (tn, dim) bf16

    # Point MLP: bf16 MXU matmuls, f32 accumulation + epilogue (ReLU).
    h = jnp.dot(x, w1_ref[...], preferred_element_type=jnp.float32)   # (tn, 128)
    h = jnp.maximum(h + b1_ref[...], 0.0).astype(jnp.bfloat16)

    h = jnp.dot(h, w2_ref[...], preferred_element_type=jnp.float32)   # (tn, 128)
    h = jnp.maximum(h + b2_ref[...], 0.0).astype(jnp.bfloat16)

    # Layer 3, chunked over output channels; each chunk's raw matmul is
    # max-reduced immediately into the resident output block.
    for c in range(_FEAT // _CHUNK):
        lo = c * _CHUNK
        z = jnp.dot(h, w3_ref[:, lo:lo + _CHUNK],
                    preferred_element_type=jnp.float32)               # (tn, CHUNK)
        tile_max = jnp.max(z, axis=0, keepdims=True)                  # (1, CHUNK)
        o_ref[0, :, lo:lo + _CHUNK] = jnp.maximum(
            o_ref[0, :, lo:lo + _CHUNK], tile_max)


def _pick_tile_n(n):
    """Largest point tile <= 2048 dividing N (amortizes ~0.35us/step overhead)."""
    for cand in (2048, 1024, 512, 256, 128):
        if n >= cand and n % cand == 0:
            return cand
    return n   # small / odd N: single full tile (always layout-legal)


@functools.partial(jax.jit, static_argnames=("tile_n",))
def tnet_forward(x_bcn, params, *, tile_n=None):
    """x_bcn: (B, dim, N) float32 (PyTorch layout). Returns (B, dim, dim)."""
    (w1, b1, w2, b2, w3, b3, d1, c1, d2, c2, d3, c3) = params
    B, dim, N = x_bcn.shape
    if tile_n is None:
        tile_n = _pick_tile_n(N)
    assert N % tile_n == 0, "N must be divisible by tile_n"
    assert _FEAT % _CHUNK == 0

    # (B, dim, N) -> (B, N, dim): point-major so channels sit on lanes; cast to
    # bf16 once (halves the kernel's HBM read of x, MXU-native operands).
    x = jnp.transpose(x_bcn, (0, 2, 1)).astype(jnp.bfloat16)

    # Zero-pad layer-1 output channels (64) to a full lane width (128) and w2's
    # input rows to match: lane-dense layer-1/2 activations, exact result
    # (padded channels produce 0 after ReLU and hit all-zero rows of w2).
    pad = (-w1.shape[1]) % _LANE
    w1p = jnp.pad(w1, ((0, 0), (0, pad)))
    b1p = jnp.pad(b1, ((0, 0), (0, pad)))
    w2p = jnp.pad(w2, ((0, pad), (0, 0)))

    conv_w = (w1p, b1p, w2p, b2, w3)
    full = lambda a: pl.BlockSpec(a.shape, lambda b, i: (0,) * a.ndim)

    flops = 2 * B * N * (dim * _LANE + _LANE * _LANE + _LANE * _FEAT)
    bytes_accessed = (x.size * x.dtype.itemsize + B * _FEAT * 4
                      + sum(a.size * a.dtype.itemsize for a in conv_w))

    pooled = pl.pallas_call(
        _point_mlp_kernel,
        out_shape=jax.ShapeDtypeStruct((B, 1, _FEAT), jnp.float32),
        grid_spec=pltpu.PrefetchScalarGridSpec(
            num_scalar_prefetch=0,
            grid=(B, N // tile_n),
            in_specs=[pl.BlockSpec((1, tile_n, dim), lambda b, i: (b, i, 0))]
                     + [full(a) for a in conv_w],
            out_specs=pl.BlockSpec((1, 1, _FEAT), lambda b, i: (b, 0, 0)),
        ),
        compiler_params=pltpu.CompilerParams(
            dimension_semantics=("parallel", "arbitrary"),
            vmem_limit_bytes=32 * 1024 * 1024),
        cost_estimate=pl.CostEstimate(flops=flops, transcendentals=0,
                                      bytes_accessed=bytes_accessed),
    )(x, *conv_w)

    # Deferred layer-3 BN shift + ReLU (exact: per-channel bias commutes with
    # the point-wise max; ReLU is monotone), then the tiny dense head as one
    # batched XLA matmul over all B rows (hoisted out of the kernel).
    g = jnp.maximum(pooled.reshape(B, _FEAT) + b3, 0.0).astype(jnp.bfloat16)
    t = jnp.dot(g, d1, preferred_element_type=jnp.float32)
    t = jnp.maximum(t + c1, 0.0).astype(jnp.bfloat16)
    t = jnp.dot(t, d2, preferred_element_type=jnp.float32)
    t = jnp.maximum(t + c2, 0.0).astype(jnp.bfloat16)
    t = jnp.dot(t, d3, preferred_element_type=jnp.float32) + c3

    return t.reshape(B, dim, dim) + jnp.eye(dim, dtype=t.dtype)


def _fold_bn(w, gamma, beta, mean, var, eps=1e-5):
    """Fold eval-mode BatchNorm into the preceding (C_in, C_out) weight."""
    scale = gamma / jnp.sqrt(var + eps)
    w_folded = (w * scale[None, :]).astype(jnp.bfloat16)
    shift = (beta - mean * scale)[None, :].astype(jnp.float32)
    return w_folded, shift


def make_params(key, embed_dim):
    """Deterministic synthetic parameters matching TNet(embed_dim) shapes."""
    def nk():
        nonlocal key
        key, sub = jax.random.split(key)
        return sub

    def bn_stats(c):
        gamma = 1.0 + 0.1 * jax.random.normal(nk(), (c,), jnp.float32)
        beta = 0.1 * jax.random.normal(nk(), (c,), jnp.float32)
        mean = 0.05 * jax.random.normal(nk(), (c,), jnp.float32)
        var = jnp.abs(1.0 + 0.1 * jax.random.normal(nk(), (c,), jnp.float32))
        return gamma, beta, mean, var

    def folded_layer(ci, co):
        # Conv1d(ci, co, k=1, bias=False)/Linear(ci, co, bias=False): store W^T (ci, co).
        w = jax.random.normal(nk(), (ci, co), jnp.float32) / jnp.sqrt(float(ci))
        return _fold_bn(w, *bn_stats(co))

    w1, b1 = folded_layer(embed_dim, 64)
    w2, b2 = folded_layer(64, 128)
    w3, b3 = folded_layer(128, 1024)
    d1, c1 = folded_layer(1024, 512)
    d2, c2 = folded_layer(512, 256)
    # Final Linear(256, dim*dim) with bias (no BN).
    d3 = (jax.random.normal(nk(), (256, embed_dim * embed_dim), jnp.float32)
          / jnp.sqrt(256.0)).astype(jnp.bfloat16)
    c3 = 0.1 * jax.random.normal(nk(), (1, embed_dim * embed_dim), jnp.float32)
    return (w1, b1, w2, b2, w3, b3, d1, c1, d2, c2, d3, c3)


def reference_forward(x_bcn, params):
    """Pure-JAX reference with the same math (bf16 operands, f32 accumulation)."""
    (w1, b1, w2, b2, w3, b3, d1, c1, d2, c2, d3, c3) = params
    B, dim, N = x_bcn.shape
    mm = functools.partial(jnp.einsum, preferred_element_type=jnp.float32)

    h = jnp.transpose(x_bcn, (0, 2, 1)).astype(jnp.bfloat16)            # (B, N, dim)
    h = jnp.maximum(mm("bnc,cd->bnd", h, w1) + b1, 0.0).astype(jnp.bfloat16)
    h = jnp.maximum(mm("bnc,cd->bnd", h, w2) + b2, 0.0).astype(jnp.bfloat16)
    h = jnp.maximum(mm("bnc,cd->bnd", h, w3) + b3, 0.0)                 # (B, N, 1024) f32
    g = jnp.max(h, axis=1).astype(jnp.bfloat16)                         # (B, 1024)
    t = jnp.maximum(mm("bk,kd->bd", g, d1) + c1, 0.0).astype(jnp.bfloat16)
    t = jnp.maximum(mm("bk,kd->bd", t, d2) + c2, 0.0).astype(jnp.bfloat16)
    t = mm("bk,kd->bd", t, d3) + c3                                     # (B, dim*dim)
    return t.reshape(B, dim, dim) + jnp.eye(dim, dtype=t.dtype)


if __name__ == "__main__":
    B, EMBED_DIM, N = 2, 64, 256   # small example; hidden widths 64/128/1024/512/256 kept exact

    key = jax.random.PRNGKey(0)
    kx, kp = jax.random.split(key)
    x = jax.random.normal(kx, (B, EMBED_DIM, N), jnp.float32)   # PyTorch layout (B, dim, N)
    params = make_params(kp, EMBED_DIM)

    out = tnet_forward(x, params)
    out = jax.block_until_ready(out)

    ref = reference_forward(x, params)
    assert out.shape == (B, EMBED_DIM, EMBED_DIM), out.shape
    max_err = float(jnp.max(jnp.abs(out - ref)))
    assert jnp.allclose(out, ref, atol=1e-2, rtol=1e-2), f"mismatch vs reference, max_err={max_err}"

    print("KERNEL_OK")
</pallas_src>

<mosaic_0001>
module attributes {stable_mosaic.version = 11 : i64} {
  func.func @_point_mlp_kernel(%arg0: i32, %arg1: i32, %arg2: memref<1x256x64xbf16, #tpu.memory_space<vmem>>, %arg3: memref<64x128xbf16, #tpu.memory_space<vmem>>, %arg4: memref<1x128xf32, #tpu.memory_space<vmem>>, %arg5: memref<128x128xbf16, #tpu.memory_space<vmem>>, %arg6: memref<1x128xf32, #tpu.memory_space<vmem>>, %arg7: memref<128x1024xbf16, #tpu.memory_space<vmem>>, %arg8: memref<1x1x1024xf32, #tpu.memory_space<vmem>>) attributes {dimension_semantics = [#tpu.dimension_semantics<parallel>, #tpu.dimension_semantics<arbitrary>], iteration_bounds = array<i64: 2, 1>, scalar_prefetch = 0 : i64, scratch_operands = 0 : i64, tpu.core_type = #tpu.core_type<tc>, window_params = [{transform_indices = @transform_0, window_bounds = array<i64: 1, 256, 64>}, {pipeline_mode = #tpu.pipeline_mode<synchronous>, transform_indices = @transform_1, window_bounds = array<i64: 64, 128>}, {pipeline_mode = #tpu.pipeline_mode<synchronous>, transform_indices = @transform_2, window_bounds = array<i64: 1, 128>}, {pipeline_mode = #tpu.pipeline_mode<synchronous>, transform_indices = @transform_3, window_bounds = array<i64: 128, 128>}, {pipeline_mode = #tpu.pipeline_mode<synchronous>, transform_indices = @transform_4, window_bounds = array<i64: 1, 128>}, {pipeline_mode = #tpu.pipeline_mode<synchronous>, transform_indices = @transform_5, window_bounds = array<i64: 128, 1024>}, {transform_indices = @transform_6, window_bounds = array<i64: 1, 1, 1024>}]} {
    %c0_i32 = arith.constant 0 : i32
    %0 = arith.cmpi eq, %arg1, %c0_i32 : i32
    %1 = arith.extui %0 : i1 to i32
    %c0_i32_0 = arith.constant 0 : i32
    %2 = arith.cmpi ne, %1, %c0_i32_0 : i32
    scf.if %2 {
      %cst_51 = arith.constant 0xFF800000 : f32
      %61 = vector.broadcast %cst_51 : f32 to vector<1x1x1024xf32>
      %c0_52 = arith.constant 0 : index
      %c0_53 = arith.constant 0 : index
      %c0_54 = arith.constant 0 : index
      %62 = vector.load %arg8[%c0_52, %c0_53, %c0_54] : memref<1x1x1024xf32, #tpu.memory_space<vmem>>, vector<1x1x1024xf32>
      tpu.vector_store %arg8[%c0_52, %c0_53, %c0_54], %61 {strides = array<i32>} : memref<1x1x1024xf32, #tpu.memory_space<vmem>>, vector<1x1x1024xf32>,
    } else {
    }
    %c0 = arith.constant 0 : index
    %c0_1 = arith.constant 0 : index
    %c0_2 = arith.constant 0 : index
    %3 = vector.load %arg2[%c0, %c0_1, %c0_2] : memref<1x256x64xbf16, #tpu.memory_space<vmem>>, vector<1x256x64xbf16>
    %4 = vector.shape_cast %3 : vector<1x256x64xbf16> to vector<256x64xbf16>
    %c0_3 = arith.constant 0 : index
    %c0_4 = arith.constant 0 : index
    %5 = vector.load %arg3[%c0_3, %c0_4] : memref<64x128xbf16, #tpu.memory_space<vmem>>, vector<64x128xbf16>
    %cst = arith.constant dense<0.000000e+00> : vector<256x128xf32>
    %6 = tpu.matmul %4, %5, %cst {dimension_numbers = #tpu.dot_dimension_numbers<[1], [0], [0], [1], [0, 0, 1, 1], [], []>} : vector<256x64xbf16>, vector<64x128xbf16>, vector<256x128xf32> -> vector<256x128xf32>
    %c0_5 = arith.constant 0 : index
    %c0_6 = arith.constant 0 : index
    %7 = vector.load %arg4[%c0_5, %c0_6] : memref<1x128xf32, #tpu.memory_space<vmem>>, vector<1x128xf32>
    %8 = vector.broadcast %7 : vector<1x128xf32> to vector<256x128xf32>
    %9 = arith.addf %6, %8 : vector<256x128xf32>
    %cst_7 = arith.constant 0.000000e+00 : f32
    %10 = vector.broadcast %cst_7 : f32 to vector<256x128xf32>
    %11 = arith.maximumf %9, %10 : vector<256x128xf32>
    %12 = arith.truncf %11 : vector<256x128xf32> to vector<256x128xbf16>
    %c0_8 = arith.constant 0 : index
    %c0_9 = arith.constant 0 : index
    %13 = vector.load %arg5[%c0_8, %c0_9] : memref<128x128xbf16, #tpu.memory_space<vmem>>, vector<128x128xbf16>
    %cst_10 = arith.constant dense<0.000000e+00> : vector<256x128xf32>
    %14 = tpu.matmul %12, %13, %cst_10 {dimension_numbers = #tpu.dot_dimension_numbers<[1], [0], [0], [1], [0, 0, 1, 1], [], []>} : vector<256x128xbf16>, vector<128x128xbf16>, vector<256x128xf32> -> vector<256x128xf32>
    %c0_11 = arith.constant 0 : index
    %c0_12 = arith.constant 0 : index
    %15 = vector.load %arg6[%c0_11, %c0_12] : memref<1x128xf32, #tpu.memory_space<vmem>>, vector<1x128xf32>
    %16 = vector.broadcast %15 : vector<1x128xf32> to vector<256x128xf32>
    %17 = arith.addf %14, %16 : vector<256x128xf32>
    %cst_13 = arith.constant 0.000000e+00 : f32
    %18 = vector.broadcast %cst_13 : f32 to vector<256x128xf32>
    %19 = arith.maximumf %17, %18 : vector<256x128xf32>
    %20 = arith.truncf %19 : vector<256x128xf32> to vector<256x128xbf16>
    %c0_14 = arith.constant 0 : index
    %c0_15 = arith.constant 0 : index
    %21 = vector.load %arg7[%c0_14, %c0_15] : memref<128x1024xbf16, #tpu.memory_space<vmem>>, vector<128x256xbf16>
    %cst_16 = arith.constant dense<0.000000e+00> : vector<256x256xf32>
    %22 = tpu.matmul %20, %21, %cst_16 {dimension_numbers = #tpu.dot_dimension_numbers<[1], [0], [0], [1], [0, 0, 1, 1], [], []>} : vector<256x128xbf16>, vector<128x256xbf16>, vector<256x256xf32> -> vector<256x256xf32>
    %cst_17 = arith.constant dense<0xFF800000> : vector<256xf32>
    %23 = vector.multi_reduction <maximumf>, %22, %cst_17 [0] : vector<256x256xf32> to vector<256xf32>
    %24 = vector.shape_cast %23 : vector<256xf32> to vector<1x256xf32>
    %c0_18 = arith.constant 0 : index
    %c0_19 = arith.constant 0 : index
    %c0_20 = arith.constant 0 : index
    %25 = vector.load %arg8[%c0_18, %c0_19, %c0_20] : memref<1x1x1024xf32, #tpu.memory_space<vmem>>, vector<1x1x256xf32>
    %26 = vector.shape_cast %25 : vector<1x1x256xf32> to vector<1x256xf32>
    %27 = arith.maximumf %26, %24 : vector<1x256xf32>
    %c0_21 = arith.constant 0 : index
    %c0_22 = arith.constant 0 : index
    %c0_23 = arith.constant 0 : index
    %28 = vector.load %arg8[%c0_21, %c0_22, %c0_23] : memref<1x1x1024xf32, #tpu.memory_space<vmem>>, vector<1x1x256xf32>
    %29 = vector.shape_cast %28 : vector<1x1x256xf32> to vector<1x256xf32>
    %30 = vector.shape_cast %27 : vector<1x256xf32> to vector<1x1x256xf32>
    tpu.vector_store %arg8[%c0_21, %c0_22, %c0_23], %30 {strides = array<i32>} : memref<1x1x1024xf32, #tpu.memory_space<vmem>>, vector<1x1x256xf32>,
    %c0_24 = arith.constant 0 : index
    %c256 = arith.constant 256 : index
    %31 = vector.load %arg7[%c0_24, %c256] : memref<128x1024xbf16, #tpu.memory_space<vmem>>, vector<128x256xbf16>
    %cst_25 = arith.constant dense<0.000000e+00> : vector<256x256xf32>
    %32 = tpu.matmul %20, %31, %cst_25 {dimension_numbers = #tpu.dot_dimension_numbers<[1], [0], [0], [1], [0, 0, 1, 1], [], []>} : vector<256x128xbf16>, vector<128x256xbf16>, vector<256x256xf32> -> vector<256x256xf32>
    %cst_26 = arith.constant dense<0xFF800000> : vector<256xf32>
    %33 = vector.multi_reduction <maximumf>, %32, %cst_26 [0] : vector<256x256xf32> to vector<256xf32>
    %34 = vector.shape_cast %33 : vector<256xf32> to vector<1x256xf32>
    %c0_27 = arith.constant 0 : index
    %c0_28 = arith.constant 0 : index
    %c256_29 = arith.constant 256 : index
    %35 = vector.load %arg8[%c0_27, %c0_28, %c256_29] : memref<1x1x1024xf32, #tpu.memory_space<vmem>>, vector<1x1x256xf32>
    %36 = vector.shape_cast %35 : vector<1x1x256xf32> to vector<1x256xf32>
    %37 = arith.maximumf %36, %34 : vector<1x256xf32>
    %c0_30 = arith.constant 0 : index
    %c0_31 = arith.constant 0 : index
    %c256_32 = arith.constant 256 : index
    %38 = vector.load %arg8[%c0_30, %c0_31, %c256_32] : memref<1x1x1024xf32, #tpu.memory_space<vmem>>, vector<1x1x256xf32>
    %39 = vector.shape_cast %38 : vector<1x1x256xf32> to vector<1x256xf32>
    %40 = vector.shape_cast %37 : vector<1x256xf32> to vector<1x1x256xf32>
    tpu.vector_store %arg8[%c0_30, %c0_31, %c256_32], %40 {strides = array<i32>} : memref<1x1x1024xf32, #tpu.memory_space<vmem>>, vector<1x1x256xf32>,
    %c0_33 = arith.constant 0 : index
    %c512 = arith.constant 512 : index
    %41 = vector.load %arg7[%c0_33, %c512] : memref<128x1024xbf16, #tpu.memory_space<vmem>>, vector<128x256xbf16>
    %cst_34 = arith.constant dense<0.000000e+00> : vector<256x256xf32>
    %42 = tpu.matmul %20, %41, %cst_34 {dimension_numbers = #tpu.dot_dimension_numbers<[1], [0], [0], [1], [0, 0, 1, 1], [], []>} : vector<256x128xbf16>, vector<128x256xbf16>, vector<256x256xf32> -> vector<256x256xf32>
    %cst_35 = arith.constant dense<0xFF800000> : vector<256xf32>
    %43 = vector.multi_reduction <maximumf>, %42, %cst_35 [0] : vector<256x256xf32> to vector<256xf32>
    %44 = vector.shape_cast %43 : vector<256xf32> to vector<1x256xf32>
    %c0_36 = arith.constant 0 : index
    %c0_37 = arith.constant 0 : index
    %c512_38 = arith.constant 512 : index
    %45 = vector.load %arg8[%c0_36, %c0_37, %c512_38] : memref<1x1x1024xf32, #tpu.memory_space<vmem>>, vector<1x1x256xf32>
    %46 = vector.shape_cast %45 : vector<1x1x256xf32> to vector<1x256xf32>
    %47 = arith.maximumf %46, %44 : vector<1x256xf32>
    %c0_39 = arith.constant 0 : index
    %c0_40 = arith.constant 0 : index
    %c512_41 = arith.constant 512 : index
    %48 = vector.load %arg8[%c0_39, %c0_40, %c512_41] : memref<1x1x1024xf32, #tpu.memory_space<vmem>>, vector<1x1x256xf32>
    %49 = vector.shape_cast %48 : vector<1x1x256xf32> to vector<1x256xf32>
    %50 = vector.shape_cast %47 : vector<1x256xf32> to vector<1x1x256xf32>
    tpu.vector_store %arg8[%c0_39, %c0_40, %c512_41], %50 {strides = array<i32>} : memref<1x1x1024xf32, #tpu.memory_space<vmem>>, vector<1x1x256xf32>,
    %c0_42 = arith.constant 0 : index
    %c768 = arith.constant 768 : index
    %51 = vector.load %arg7[%c0_42, %c768] : memref<128x1024xbf16, #tpu.memory_space<vmem>>, vector<128x256xbf16>
    %cst_43 = arith.constant dense<0.000000e+00> : vector<256x256xf32>
    %52 = tpu.matmul %20, %51, %cst_43 {dimension_numbers = #tpu.dot_dimension_numbers<[1], [0], [0], [1], [0, 0, 1, 1], [], []>} : vector<256x128xbf16>, vector<128x256xbf16>, vector<256x256xf32> -> vector<256x256xf32>
    %cst_44 = arith.constant dense<0xFF800000> : vector<256xf32>
    %53 = vector.multi_reduction <maximumf>, %52, %cst_44 [0] : vector<256x256xf32> to vector<256xf32>
    %54 = vector.shape_cast %53 : vector<256xf32> to vector<1x256xf32>
    %c0_45 = arith.constant 0 : index
    %c0_46 = arith.constant 0 : index
    %c768_47 = arith.constant 768 : index
    %55 = vector.load %arg8[%c0_45, %c0_46, %c768_47] : memref<1x1x1024xf32, #tpu.memory_space<vmem>>, vector<1x1x256xf32>
    %56 = vector.shape_cast %55 : vector<1x1x256xf32> to vector<1x256xf32>
    %57 = arith.maximumf %56, %54 : vector<1x256xf32>
    %c0_48 = arith.constant 0 : index
    %c0_49 = arith.constant 0 : index
    %c768_50 = arith.constant 768 : index
    %58 = vector.load %arg8[%c0_48, %c0_49, %c768_50] : memref<1x1x1024xf32, #tpu.memory_space<vmem>>, vector<1x1x256xf32>
    %59 = vector.shape_cast %58 : vector<1x1x256xf32> to vector<1x256xf32>
    %60 = vector.shape_cast %57 : vector<1x256xf32> to vector<1x1x256xf32>
    tpu.vector_store %arg8[%c0_48, %c0_49, %c768_50], %60 {strides = array<i32>} : memref<1x1x1024xf32, #tpu.memory_space<vmem>>, vector<1x1x256xf32>,
    return
  }
  func.func @transform_0(%arg0: i32, %arg1: i32) -> (i32, i32, i32) {
    %c0_i32 = arith.constant 0 : i32
    %c0_i32_0 = arith.constant 0 : i32
    return %arg0, %arg1, %c0_i32 : i32, i32, i32
  }
  func.func @transform_1(%arg0: i32, %arg1: i32) -> (i32, i32) {
    %c0_i32 = arith.constant 0 : i32
    %c0_i32_0 = arith.constant 0 : i32
    %c0_i32_1 = arith.constant 0 : i32
    return %c0_i32, %c0_i32_0 : i32, i32
  }
  func.func @transform_2(%arg0: i32, %arg1: i32) -> (i32, i32) {
    %c0_i32 = arith.constant 0 : i32
    %c0_i32_0 = arith.constant 0 : i32
    %c0_i32_1 = arith.constant 0 : i32
    return %c0_i32, %c0_i32_0 : i32, i32
  }
  func.func @transform_3(%arg0: i32, %arg1: i32) -> (i32, i32) {
    %c0_i32 = arith.constant 0 : i32
    %c0_i32_0 = arith.constant 0 : i32
    %c0_i32_1 = arith.constant 0 : i32
    return %c0_i32, %c0_i32_0 : i32, i32
  }
  func.func @transform_4(%arg0: i32, %arg1: i32) -> (i32, i32) {
    %c0_i32 = arith.constant 0 : i32
    %c0_i32_0 = arith.constant 0 : i32
    %c0_i32_1 = arith.constant 0 : i32
    return %c0_i32, %c0_i32_0 : i32, i32
  }
  func.func @transform_5(%arg0: i32, %arg1: i32) -> (i32, i32) {
    %c0_i32 = arith.constant 0 : i32
    %c0_i32_0 = arith.constant 0 : i32
    %c0_i32_1 = arith.constant 0 : i32
    return %c0_i32, %c0_i32_0 : i32, i32
  }
  func.func @transform_6(%arg0: i32, %arg1: i32) -> (i32, i32, i32) {
    %c0_i32 = arith.constant 0 : i32
    %c0_i32_0 = arith.constant 0 : i32
    %c0_i32_1 = arith.constant 0 : i32
    return %arg0, %c0_i32, %c0_i32_0 : i32, i32, i32
  }
}

</mosaic_0001>

<llo_original>
// kernel: tnet_forward.1
$region0: #{tnet_forward.1}
  #allocation0 [shape = 'u32[]', space=smem, size = 0x4, offset = 0x4, fixed_abs, tag = 'smem constant byte address 0x4 - core index']
  #allocation1 [shape = 'u32[144,128]{1,0:T(1,128)}', space=vmem, size = 0x12000, scoped, tag = 'internal scratch']
  %s0 = inlined_call_operand.vmem [shape: bf16[2,256,64], index: 0, kind: input, shape index: {}]
  %s1 = inlined_call_operand.vmem [shape: bf16[64,128], index: 1, kind: input, shape index: {}]
  %s2 = inlined_call_operand.vmem [shape: f32[1,128], index: 2, kind: input, shape index: {}]
  %s3 = inlined_call_operand.vmem [shape: bf16[128,128], index: 3, kind: input, shape index: {}]
  %s4 = inlined_call_operand.hbm [shape: f32[1,128], index: 4, kind: input, shape index: {}]
  %s5 = inlined_call_operand.hbm [shape: bf16[128,1024], index: 5, kind: input, shape index: {}]
  %s6 = inlined_call_operand.vmem [shape: f32[2,1,1024], index: 6, kind: output, shape index: {}]
  %s7 = sld [smem:[#allocation0]]
  $region69: #{tnet_forward.1} parent=0
    _
  %s9 = ssub.s32 1, %s7
  %s10 = scalar_select 0, %s9, %s7
  $region1: #{tnet_forward.1} parent=0
    #allocation2 [shape = 'u8[512]{0}', space=vmem, size = 0x400, scoped, tag = 'input window, operand 4, single buffered']
    #allocation3 [shape = 's32[2]{0}', space=sflag, size = 0x8, scoped, tag = 'scoped memory for tnet_forward.1']
    #allocation4 [shape = 'u8[262144]{0}', space=vmem, size = 0x40000, scoped, tag = 'input window, operand 5, single buffered']
    #allocation5 [shape = 's32[1]{0}', space=sflag, size = 0x4, scoped, tag = 'scoped memory for tnet_forward.1']
    %11 = vsyncpa [#allocation3], 0
    %12 = vsyncpa [#allocation5], 0
    loop: start=0, step=1, limit=4
    $region2: #{tnet_forward.1} parent=1 // loop_pre_header
      _
    $region3: #{tnet_forward.1} parent=1 // loop_header
      %s14 = sphi 0, %s18
      %p15 = scmp.ge.s32.totalorder %s14, 4
      %s21 = sphi 0, %s33
      %s22 = sphi 0, %s29
      %s23 = sphi 0, %s21
      %s24 = sphi 0, %s22
      %s25 = sphi 0, %s23
      %s26 = sphi 0, %s24
      %s38 = sphi 0, %s40
      %s41 = sphi 0, %s38
      %s42 = sphi 0, %s41
      %s58 = sphi 0, %s42
      %s62 = sphi 0, %s62
      %s64 = sphi 0, %s62
      %s65 = sphi 0, %s64
      %s79 = sphi 0, %s65
      %s83 = sphi 0, %s83
      %s85 = sphi 0, %s83
      %s86 = sphi 0, %s85
      %s100 = sphi 0, %s86
      %s104 = sphi 0, %s104
      %s106 = sphi 0, %s104
      %s107 = sphi 0, %s106
      %s121 = sphi 0, %s107
      %s125 = sphi 0, %s125
      %s127 = sphi 0, %s125
      %s128 = sphi 0, %s127
      %s142 = sphi 0, %s128
      %s146 = sphi 0, %s146
      %s148 = sphi 0, %s146
      %s149 = sphi 0, %s148
      %s163 = sphi 0, %s149
      %s169 = sphi 0, %s171
      %s172 = sphi 0, %s169
      %s173 = sphi 0, %s172
      %s189 = sphi 0, %s173
    $region4: #{tnet_forward.1} parent=1 // loop_header_branch
      %17 = sbr.rel (%p15) target = $region8
    $region5: #{tnet_forward.1} parent=1 // loop_body
      %s19 = ssub.s32 %s14, 1
      %s20 = ssub.s32 %s14, 2
      %s27 = sadd.s32 1, %s22
      %p28 = scmp.ge.s32.totalorder %s27, 1
      %s29 = scalar_select %p28, 0, %s27
      %s30 = sadd.s32 1, %s21
      %s31 = scalar_select %p28, %s30, %s21
      %p32 = scmp.ge.s32.totalorder %s31, 2
      %s33 = scalar_select %p32, 0, %s31
      %s34 = ssub.s32 %s21, %s33
      %s35 = ssub.s32 %s22, %s29
      %s36 = sor.u32 %s34, %s35
      %p37 = scmp.eq.s32.totalorder %s36, 0
      %s39 = sadd.s32 %s38, 1
      %s40 = scalar_select %p37, %s38, %s39
      %p43 = pneg %p37
      %p44 = scmp.eq.s32.totalorder %s14, 1
      %p45 = por %p43, %p44
      %p46 = scmp.ne.s32.totalorder %s38, %s41
      %p47 = scmp.eq.s32.totalorder %s14, 0
      %p48 = por %p46, %p47
      %p49 = scmp.ne.s32.totalorder %s38, %s41
      %p50 = scmp.eq.s32.totalorder %s19, 1
      %p51 = por %p49, %p50
      %p52 = scmp.ne.s32.totalorder %s41, %s42
      %p53 = scmp.eq.s32.totalorder %s19, 0
      %p54 = por %p52, %p53
      %p55 = scmp.ne.s32.totalorder %s41, %s42
      %p56 = scmp.eq.s32.totalorder %s20, 1
      %p57 = por %p55, %p56
      %p59 = scmp.ne.s32.totalorder %s42, %s58
      %p60 = scmp.eq.s32.totalorder %s20, 0
      %p61 = por %p59, %p60
      %s63 = sadd.s32 %s62, 1
      %p66 = scmp.eq.s32.totalorder %s14, 1
      %p67 = scmp.ne.s32.totalorder %s62, %s64
      %p68 = scmp.eq.s32.totalorder %s14, 0
      %p69 = por %p67, %p68
      %p70 = scmp.ne.s32.totalorder %s62, %s64
      %p71 = scmp.eq.s32.totalorder %s19, 1
      %p72 = por %p70, %p71
      %p73 = scmp.ne.s32.totalorder %s64, %s65
      %p74 = scmp.eq.s32.totalorder %s19, 0
      %p75 = por %p73, %p74
      %p76 = scmp.ne.s32.totalorder %s64, %s65
      %p77 = scmp.eq.s32.totalorder %s20, 1
      %p78 = por %p76, %p77
      %p80 = scmp.ne.s32.totalorder %s65, %s79
      %p81 = scmp.eq.s32.totalorder %s20, 0
      %p82 = por %p80, %p81
      %s84 = sadd.s32 %s83, 1
      %p87 = scmp.eq.s32.totalorder %s14, 1
      %p88 = scmp.ne.s32.totalorder %s83, %s85
      %p89 = scmp.eq.s32.totalorder %s14, 0
      %p90 = por %p88, %p89
      %p91 = scmp.ne.s32.totalorder %s83, %s85
      %p92 = scmp.eq.s32.totalorder %s19, 1
      %p93 = por %p91, %p92
      %p94 = scmp.ne.s32.totalorder %s85, %s86
      %p95 = scmp.eq.s32.totalorder %s19, 0
      %p96 = por %p94, %p95
      %p97 = scmp.ne.s32.totalorder %s85, %s86
      %p98 = scmp.eq.s32.totalorder %s20, 1
      %p99 = por %p97, %p98
      %p101 = scmp.ne.s32.totalorder %s86, %s100
      %p102 = scmp.eq.s32.totalorder %s20, 0
      %p103 = por %p101, %p102
      %s105 = sadd.s32 %s104, 1
      %p108 = scmp.eq.s32.totalorder %s14, 1
      %p109 = scmp.ne.s32.totalorder %s104, %s106
      %p110 = scmp.eq.s32.totalorder %s14, 0
      %p111 = por %p109, %p110
      %p112 = scmp.ne.s32.totalorder %s104, %s106
      %p113 = scmp.eq.s32.totalorder %s19, 1
      %p114 = por %p112, %p113
      %p115 = scmp.ne.s32.totalorder %s106, %s107
      %p116 = scmp.eq.s32.totalorder %s19, 0
      %p117 = por %p115, %p116
      %p118 = scmp.ne.s32.totalorder %s106, %s107
      %p119 = scmp.eq.s32.totalorder %s20, 1
      %p120 = por %p118, %p119
      %p122 = scmp.ne.s32.totalorder %s107, %s121
      %p123 = scmp.eq.s32.totalorder %s20, 0
      %p124 = por %p122, %p123
      %s126 = sadd.s32 %s125, 1
      %p129 = scmp.eq.s32.totalorder %s14, 1
      %p130 = scmp.ne.s32.totalorder %s125, %s127
      %p131 = scmp.eq.s32.totalorder %s14, 0
      %p132 = por %p130, %p131
      %p133 = scmp.ne.s32.totalorder %s125, %s127
      %p134 = scmp.eq.s32.totalorder %s19, 1
      %p135 = por %p133, %p134
      %p136 = scmp.ne.s32.totalorder %s127, %s128
      %p137 = scmp.eq.s32.totalorder %s19, 0
      %p138 = por %p136, %p137
      %p139 = scmp.ne.s32.totalorder %s127, %s128
      %p140 = scmp.eq.s32.totalorder %s20, 1
      %p141 = por %p139, %p140
      %p143 = scmp.ne.s32.totalorder %s128, %s142
      %p144 = scmp.eq.s32.totalorder %s20, 0
      %p145 = por %p143, %p144
      %s147 = sadd.s32 %s146, 1
      %p150 = scmp.eq.s32.totalorder %s14, 1
      %p151 = scmp.ne.s32.totalorder %s146, %s148
      %p152 = scmp.eq.s32.totalorder %s14, 0
      %p153 = por %p151, %p152
      %p154 = scmp.ne.s32.totalorder %s146, %s148
      %p155 = scmp.eq.s32.totalorder %s19, 1
      %p156 = por %p154, %p155
      %p157 = scmp.ne.s32.totalorder %s148, %s149
      %p158 = scmp.eq.s32.totalorder %s19, 0
      %p159 = por %p157, %p158
      %p160 = scmp.ne.s32.totalorder %s148, %s149
      %p161 = scmp.eq.s32.totalorder %s20, 1
      %p162 = por %p160, %p161
      %p164 = scmp.ne.s32.totalorder %s149, %s163
      %p165 = scmp.eq.s32.totalorder %s20, 0
      %p166 = por %p164, %p165
      %s167 = ssub.s32 %s21, %s33
      %p168 = scmp.eq.s32.totalorder %s167, 0
      %s170 = sadd.s32 %s169, 1
      %s171 = scalar_select %p168, %s169, %s170
      %p174 = pneg %p168
      %p175 = scmp.eq.s32.totalorder %s14, 1
      %p176 = por %p174, %p175
      %p177 = scmp.ne.s32.totalorder %s169, %s172
      %p178 = scmp.eq.s32.totalorder %s14, 0
      %p179 = por %p177, %p178
      %p180 = scmp.ne.s32.totalorder %s169, %s172
      %p181 = scmp.eq.s32.totalorder %s19, 1
      %p182 = por %p180, %p181
      %p183 = scmp.ne.s32.totalorder %s172, %s173
      %p184 = scmp.eq.s32.totalorder %s19, 0
      %p185 = por %p183, %p184
      %p186 = scmp.ne.s32.totalorder %s172, %s173
      %p187 = scmp.eq.s32.totalorder %s20, 1
      %p188 = por %p186, %p187
      %p190 = scmp.ne.s32.totalorder %s173, %s189
      %p191 = scmp.eq.s32.totalorder %s20, 0
      %p192 = por %p190, %p191
      %p193 = scmp.le.s32.totalorder 1, %s14
      %p194 = scmp.lt.s32.totalorder %s14, 3
      %p195 = pnand %p193, %p194
      %p196 = pneg %p195
      // Predicated region
      $region9: #{tnet_forward.1} parent=5 // pred_check
        _
      $region10: #{tnet_forward.1} parent=5 // pred_check_branch
        %198 = sbr.rel (%p195) target = $region12
      $region11: #{tnet_forward.1} parent=5 // pred_region
        %s199 = ssub.s32 %s14, 1
        // Predicated region
        $region13: #{tnet_forward.1} parent=11 // pred_check
          %p200 = pneg %p75
        $region14: #{tnet_forward.1} parent=11 // pred_check_branch
          %202 = sbr.rel (%p200) target = $region16
        $region15: #{tnet_forward.1} parent=11 // pred_region
          _
        $region16: #{tnet_forward.1} parent=11 // pred_fallthru
          _
        // Predicated region
        $region17: #{tnet_forward.1} parent=11 // pred_check
          %p203 = pneg %p96
        $region18: #{tnet_forward.1} parent=11 // pred_check_branch
          %205 = sbr.rel (%p203) target = $region20
        $region19: #{tnet_forward.1} parent=11 // pred_region
          _
        $region20: #{tnet_forward.1} parent=11 // pred_fallthru
          _
        // Predicated region
        $region21: #{tnet_forward.1} parent=11 // pred_check
          %p206 = pneg %p117
        $region22: #{tnet_forward.1} parent=11 // pred_check_branch
          %208 = sbr.rel (%p206) target = $region24
        $region23: #{tnet_forward.1} parent=11 // pred_region
          _
        $region24: #{tnet_forward.1} parent=11 // pred_fallthru
          _
        // Predicated region
        $region25: #{tnet_forward.1} parent=11 // pred_check
          %p209 = pneg %p138
        $region26: #{tnet_forward.1} parent=11 // pred_check_branch
          %211 = sbr.rel (%p209) target = $region28
        $region27: #{tnet_forward.1} parent=11 // pred_region
          %s213 = ssub.s32 16, 16
          %214 = vsyncadd [#allocation3], %s213
          %s216 = sshll.u32 [#allocation2], 4
          %s217 = int_to_ptr.vmem [resolvable:$true] %s216
          %219 = dma.hbm_to_vmem [thread:$0]  %s4, 16, %s217, [#allocation3]
        $region28: #{tnet_forward.1} parent=11 // pred_fallthru
          _
        // Predicated region
        $region29: #{tnet_forward.1} parent=11 // pred_check
          %p220 = pneg %p159
        $region30: #{tnet_forward.1} parent=11 // pred_check_branch
          %222 = sbr.rel (%p220) target = $region32
        $region31: #{tnet_forward.1} parent=11 // pred_region
          %s224 = ssub.s32 8192, 8192
          %225 = vsyncadd [#allocation5], %s224
          %s226 = sshll.u32 [#allocation4], 4
          %s227 = int_to_ptr.vmem [resolvable:$true] %s226
          %232 = dma.hbm_to_vmem [thread:$0]  %s5, 8192, %s227, [#allocation5], 512, 512, 32
        $region32: #{tnet_forward.1} parent=11 // pred_fallthru
          _
      $region12: #{tnet_forward.1} parent=5 // pred_fallthru
        _
      %p233 = scmp.lt.s32.totalorder %s14, 2
      // Predicated region
      $region33: #{tnet_forward.1} parent=5 // pred_check
        %p234 = pneg %p233
      $region34: #{tnet_forward.1} parent=5 // pred_check_branch
        %236 = sbr.rel (%p234) target = $region36
      $region35: #{tnet_forward.1} parent=5 // pred_region
        // Predicated region
        $region37: #{tnet_forward.1} parent=35 // pred_check
          %p237 = pneg %p48
        $region38: #{tnet_forward.1} parent=35 // pred_check_branch
          %239 = sbr.rel (%p237) target = $region40
        $region39: #{tnet_forward.1} parent=35 // pred_region
          %s240 = smul.u32 32, %s22
          %p241 = scmp.lt.s32.totalorder %s21, 1
          %s242 = scalar_select %p241, %s21, 1
          %p243 = scmp.lt.s32.totalorder %s240, 31
          %s244 = scalar_select %p243, %s240, 31
          %s245 = smul.addr %s242, 32
          %s246 = sadd.s32 %s244, %s245
          %s247 = smul.addr %s246, 4
          %s248 = scalar_lea.vmem %s0, %s247
          %s249 = smul.u32 32, %s22
        $region40: #{tnet_forward.1} parent=35 // pred_fallthru
          _
      $region36: #{tnet_forward.1} parent=5 // pred_fallthru
        _
      %p250 = scmp.le.s32.totalorder 1, %s14
      %p251 = scmp.lt.s32.totalorder %s14, 3
      %p252 = pnand %p250, %p251
      %p253 = pneg %p252
      // Predicated region
      $region41: #{tnet_forward.1} parent=5 // pred_check
        _
      $region42: #{tnet_forward.1} parent=5 // pred_check_branch
        %255 = sbr.rel (%p252) target = $region44
      $region43: #{tnet_forward.1} parent=5 // pred_region
        %s256 = ssub.s32 %s14, 1
        // Predicated region
        $region45: #{tnet_forward.1} parent=43 // pred_check
          %p257 = pneg %p138
        $region46: #{tnet_forward.1} parent=43 // pred_check_branch
          %259 = sbr.rel (%p257) target = $region48
        $region47: #{tnet_forward.1} parent=43 // pred_region
          %260 = dma.done [#allocation3], 16
        $region48: #{tnet_forward.1} parent=43 // pred_fallthru
          _
        // Predicated region
        $region49: #{tnet_forward.1} parent=43 // pred_check
          %p261 = pneg %p159
        $region50: #{tnet_forward.1} parent=43 // pred_check_branch
          %263 = sbr.rel (%p261) target = $region52
        $region51: #{tnet_forward.1} parent=43 // pred_region
          %264 = dma.done [#allocation5], 8192
        $region52: #{tnet_forward.1} parent=43 // pred_fallthru
          _
        %s265 = smul.u32 32, %s24
        %p266 = scmp.lt.s32.totalorder %s23, 1
        %s267 = scalar_select %p266, %s23, 1
        %p268 = scmp.lt.s32.totalorder %s265, 31
        %s269 = scalar_select %p268, %s265, 31
        %s270 = smul.addr %s267, 32
        %s271 = sadd.s32 %s269, %s270
        %s272 = smul.addr %s271, 4
        %s273 = scalar_lea.vmem %s0, %s272
        %p274 = pneg %p54
        %p275 = pneg %p51
        %p276 = pneg %p75
        %p277 = pneg %p72
        %p278 = pneg %p96
        %p279 = pneg %p93
        %p280 = pneg %p117
        %p281 = pneg %p114
        %p282 = pneg %p138
        %p283 = pneg %p135
        %p284 = pneg %p159
        %p285 = pneg %p156
        %p286 = pneg %p185
        %p287 = pneg %p182
        %p288 = scmp.lt.s32.totalorder %s23, 1
        %s289 = scalar_select %p288, %s23, 1
        %s290 = smul.addr %s289, 8
        %s291 = scalar_lea.vmem %s6, %s290
        %s292 = smul.u32 32, %s24
        %p293 = scmp.lt.s32.totalorder %s23, 1
        %s294 = scalar_select %p293, %s23, 1
        %p295 = scmp.lt.s32.totalorder %s292, 31
        %s296 = scalar_select %p295, %s292, 31
        %s297 = smul.addr %s294, 32
        %s298 = sadd.s32 %s296, %s297
        %s299 = smul.addr %s298, 4
        %s300 = scalar_lea.vmem %s0, %s299
        %s301 = smul.u32 32, %s24
        %p302 = scmp.lt.s32.totalorder %s23, 1
        %s303 = scalar_select %p302, %s23, 1
        %s304 = smul.addr %s303, 8
        %s305 = scalar_lea.vmem %s6, %s304
        %p307 = scmp.eq.s32.totalorder %s24, 0
        // Predicated region
        $region53: #{tnet_forward.1} parent=43 // pred_check
          %p308 = pneg %p307
        $region54: #{tnet_forward.1} parent=43 // pred_check_branch
          %310 = sbr.rel (%p308) target = $region56
        $region55: #{tnet_forward.1} parent=43 // pred_region
          %311 = vst [vmem:[%s305] sm:$0xff] -inf
        $region56: #{tnet_forward.1} parent=43 // pred_fallthru
          _
        %v312 = vld [vmem:[%s300] sm:$0xf]
        %v313 = vld [vmem:[%s300 + $0x4] sm:$0xf]
        %v314 = vld [vmem:[%s300 + $0x8] sm:$0xf]
        %v315 = vld [vmem:[%s300 + $0xc] sm:$0xf]
        %v316 = vld [vmem:[%s300 + $0x10] sm:$0xf]
        %v317 = vld [vmem:[%s300 + $0x14] sm:$0xf]
        %v318 = vld [vmem:[%s300 + $0x18] sm:$0xf]
        %v319 = vld [vmem:[%s300 + $0x1c] sm:$0xf]
        %v320 = vld [vmem:[%s300 + $0x20] sm:$0xf]
        %v321 = vld [vmem:[%s300 + $0x24] sm:$0xf]
        %v322 = vld [vmem:[%s300 + $0x28] sm:$0xf]
        %v323 = vld [vmem:[%s300 + $0x2c] sm:$0xf]
        %v324 = vld [vmem:[%s300 + $0x30] sm:$0xf]
        %v325 = vld [vmem:[%s300 + $0x34] sm:$0xf]
        %v326 = vld [vmem:[%s300 + $0x38] sm:$0xf]
        %v327 = vld [vmem:[%s300 + $0x3c] sm:$0xf]
        %v328 = vld [vmem:[%s300 + $0x40] sm:$0xf]
        %v329 = vld [vmem:[%s300 + $0x44] sm:$0xf]
        %v330 = vld [vmem:[%s300 + $0x48] sm:$0xf]
        %v331 = vld [vmem:[%s300 + $0x4c] sm:$0xf]
        %v332 = vld [vmem:[%s300 + $0x50] sm:$0xf]
        %v333 = vld [vmem:[%s300 + $0x54] sm:$0xf]
        %v334 = vld [vmem:[%s300 + $0x58] sm:$0xf]
        %v335 = vld [vmem:[%s300 + $0x5c] sm:$0xf]
        %v336 = vld [vmem:[%s300 + $0x60] sm:$0xf]
        %v337 = vld [vmem:[%s300 + $0x64] sm:$0xf]
        %v338 = vld [vmem:[%s300 + $0x68] sm:$0xf]
        %v339 = vld [vmem:[%s300 + $0x6c] sm:$0xf]
        %v340 = vld [vmem:[%s300 + $0x70] sm:$0xf]
        %v341 = vld [vmem:[%s300 + $0x74] sm:$0xf]
        %v342 = vld [vmem:[%s300 + $0x78] sm:$0xf]
        %v343 = vld [vmem:[%s300 + $0x7c] sm:$0xf]
        %v344 = vld [vmem:[%s1] sm:$0xf]
        %v345 = vld [vmem:[%s1 + $0x4] sm:$0xf]
        %v346 = vld [vmem:[%s1 + $0x8] sm:$0xf]
        %v347 = vld [vmem:[%s1 + $0xc] sm:$0xf]
        %v348 = vld [vmem:[%s1 + $0x10] sm:$0xf]
        %v349 = vld [vmem:[%s1 + $0x14] sm:$0xf]
        %v350 = vld [vmem:[%s1 + $0x18] sm:$0xf]
        %v351 = vld [vmem:[%s1 + $0x1c] sm:$0xf]
        %v352 = vld [vmem:[%s2] sm:$0x1]
        %v354 = vlaneseq
        %v355 = vshrl.u32 %v354, 7
        %v356 = vsub.s32 0, %v355
        %v357 = vrot.slane %v352, %v356
        %v391 = vunpack.c.l.b16 %v312
        %v392 = vunpack.c.l.b16 %v313
        %v393 = vunpack.c.l.b16 %v314
        %v394 = vunpack.c.l.b16 %v315
        %v395 = vunpack.c.l.b16 %v316
        %v396 = vunpack.c.l.b16 %v317
        %v397 = vunpack.c.l.b16 %v318
        %v398 = vunpack.c.l.b16 %v319
        %v399 = vunpack.c.l.b16 %v320
        %v400 = vunpack.c.l.b16 %v321
        %v401 = vunpack.c.l.b16 %v322
        %v402 = vunpack.c.l.b16 %v323
        %v403 = vunpack.c.l.b16 %v324
        %v404 = vunpack.c.l.b16 %v325
        %v405 = vunpack.c.l.b16 %v326
        %v406 = vunpack.c.l.b16 %v327
        %v407 = vunpack.c.l.b16 %v328
        %v408 = vunpack.c.l.b16 %v329
        %v409 = vunpack.c.l.b16 %v330
        %v410 = vunpack.c.l.b16 %v331
        %v411 = vunpack.c.l.b16 %v332
        %v412 = vunpack.c.l.b16 %v333
        %v413 = vunpack.c.l.b16 %v334
        %v414 = vunpack.c.l.b16 %v335
        %v415 = vunpack.c.l.b16 %v336
        %v416 = vunpack.c.l.b16 %v337
        %v417 = vunpack.c.l.b16 %v338
        %v418 = vunpack.c.l.b16 %v339
        %v419 = vunpack.c.l.b16 %v340
        %v420 = vunpack.c.l.b16 %v341
        %v421 = vunpack.c.l.b16 %v342
        %v422 = vunpack.c.l.b16 %v343
        %v423 = vpack.c.b16 %v392, %v391
        %v424 = vpack.c.b16 %v394, %v393
        %v425 = vpack.c.b16 %v396, %v395
        %v426 = vpack.c.b16 %v398, %v397
        %v427 = vpack.c.b16 %v400, %v399
        %v428 = vpack.c.b16 %v402, %v401
        %v429 = vpack.c.b16 %v404, %v403
        %v430 = vpack.c.b16 %v406, %v405
        %v431 = vpack.c.b16 %v408, %v407
        %v432 = vpack.c.b16 %v410, %v409
        %v433 = vpack.c.b16 %v412, %v411
        %v434 = vpack.c.b16 %v414, %v413
        %v435 = vpack.c.b16 %v416, %v415
        %v436 = vpack.c.b16 %v418, %v417
        %v437 = vpack.c.b16 %v420, %v419
        %v438 = vpack.c.b16 %v422, %v421
        %v447 = vunpack.c.l.b16 %v344
        %v448 = vunpack.c.l.b16 %v345
        %v449 = vunpack.c.l.b16 %v346
        %v450 = vunpack.c.l.b16 %v347
        %v451 = vunpack.c.l.b16 %v348
        %v452 = vunpack.c.l.b16 %v349
        %v453 = vunpack.c.l.b16 %v350
        %v454 = vunpack.c.l.b16 %v351
        %v455 = vpack.c.b16 %v448, %v447
        %v456 = vpack.c.b16 %v450, %v449
        %v457 = vpack.c.b16 %v452, %v451
        %v458 = vpack.c.b16 %v454, %v453
        %vm463 = vcmask 523264
        %v465 = vsel %vm463, %v423, 0
        %v468 = vsel %vm463, %v424, 0
        %v471 = vsel %vm463, %v425, 0
        %v474 = vsel %vm463, %v426, 0
        %v477 = vsel %vm463, %v427, 0
        %v480 = vsel %vm463, %v428, 0
        %v483 = vsel %vm463, %v429, 0
        %v486 = vsel %vm463, %v430, 0
        %v489 = vsel %vm463, %v431, 0
        %v492 = vsel %vm463, %v432, 0
        %v495 = vsel %vm463, %v433, 0
        %v498 = vsel %vm463, %v434, 0
        %v501 = vsel %vm463, %v435, 0
        %v504 = vsel %vm463, %v436, 0
        %v507 = vsel %vm463, %v437, 0
        %v510 = vsel %vm463, %v438, 0
        %512 = vmatprep.subr.bf16.mxu0 0
        %513 = vmatpush1.bf16.msra.mxu0 0
        %514 = vmatprep.subr.bf16.mxu0 0
        %515 = vmatpush1.bf16.msra.mxu0 0
        %516 = vmatprep.subr.bf16.mxu0 0
        %517 = vmatpush1.bf16.msra.mxu0 0
        %518 = vmatprep.subr.bf16.mxu0 0
        %519 = vmatpush1.bf16.msra.mxu0 0
        %520 = vmatprep.subr.bf16.mxu0 0
        %521 = vmatpush1.bf16.msra.mxu0 %v458
        %522 = vmatprep.subr.bf16.mxu0 0
        %523 = vmatpush1.bf16.msra.mxu0 %v457
        %524 = vmatprep.subr.bf16.mxu0 0
        %525 = vmatpush1.bf16.msra.mxu0 %v456
        %526 = vmatprep.subr.bf16.mxu0 0
        %527 = vmatpush1.bf16.msra.mxu0 %v455
        %528 = vmatprep.subr.bf16.mxu0 0
        %529 = vmatpush2.bf16.msra.mxu0 0
        %530 = vmatprep.subr.bf16.mxu0 0
        %531 = vmatpush2.bf16.msra.mxu0 0
        %532 = vmatprep.subr.bf16.mxu0 0
        %533 = vmatpush2.bf16.msra.mxu0 0
        %534 = vmatprep.subr.bf16.mxu0 0
        %535 = vmatpush2.bf16.msra.mxu0 0
        %536 = vmatprep.subr.bf16.mxu0 0
        %537 = vmatpush2.bf16.msra.mxu0 0
        %538 = vmatprep.subr.bf16.mxu0 0
        %539 = vmatpush2.bf16.msra.mxu0 0
        %540 = vmatprep.subr.bf16.mxu0 0
        %541 = vmatpush2.bf16.msra.mxu0 0
        %542 = vmatprep.subr.bf16.mxu0 0
        %543 = vmatpush2.bf16.msra.mxu0 0
        %544 = vmatprep.mubr.bf16.mxu0 0
        %545 = vmatmul.mubr.bf16.gmra.mxu0 %v465
        %v546 = vpop.f32.mrf.mxu0
        %v547 = vadd.f32 %v357, %v546
        %v548 = vpop.f32.mrf.mxu0
        %v549 = vpop.f32.mrf.mxu0
        %v550 = vadd.f32 %v357, %v549
        %v551 = vpop.f32.mrf.mxu0
        %552 = vmatprep.mubr.bf16.mxu0 0
        %553 = vmatmul.mubr.bf16.gmra.mxu0 %v468
        %v554 = vpop.f32.mrf.mxu0
        %v555 = vadd.f32 %v357, %v554
        %v556 = vpop.f32.mrf.mxu0
        %v557 = vpop.f32.mrf.mxu0
        %v558 = vadd.f32 %v357, %v557
        %v559 = vpop.f32.mrf.mxu0
        %560 = vmatprep.mubr.bf16.mxu0 0
        %561 = vmatmul.mubr.bf16.gmra.mxu0 %v471
        %v562 = vpop.f32.mrf.mxu0
        %v563 = vadd.f32 %v357, %v562
        %v564 = vpop.f32.mrf.mxu0
        %v565 = vpop.f32.mrf.mxu0
        %v566 = vadd.f32 %v357, %v565
        %v567 = vpop.f32.mrf.mxu0
        %568 = vmatprep.mubr.bf16.mxu0 0
        %569 = vmatmul.mubr.bf16.gmra.mxu0 %v474
        %v570 = vpop.f32.mrf.mxu0
        %v571 = vadd.f32 %v357, %v570
        %v572 = vpop.f32.mrf.mxu0
        %v573 = vpop.f32.mrf.mxu0
        %v574 = vadd.f32 %v357, %v573
        %v575 = vpop.f32.mrf.mxu0
        %576 = vmatprep.mubr.bf16.mxu0 0
        %577 = vmatmul.mubr.bf16.gmra.mxu0 %v477
        %v578 = vpop.f32.mrf.mxu0
        %v579 = vadd.f32 %v357, %v578
        %v580 = vpop.f32.mrf.mxu0
        %v581 = vpop.f32.mrf.mxu0
        %v582 = vadd.f32 %v357, %v581
        %v583 = vpop.f32.mrf.mxu0
        %584 = vmatprep.mubr.bf16.mxu0 0
        %585 = vmatmul.mubr.bf16.gmra.mxu0 %v480
        %v586 = vpop.f32.mrf.mxu0
        %v587 = vadd.f32 %v357, %v586
        %v588 = vpop.f32.mrf.mxu0
        %v589 = vpop.f32.mrf.mxu0
        %v590 = vadd.f32 %v357, %v589
        %v591 = vpop.f32.mrf.mxu0
        %592 = vmatprep.mubr.bf16.mxu0 0
        %593 = vmatmul.mubr.bf16.gmra.mxu0 %v483
        %v594 = vpop.f32.mrf.mxu0
        %v595 = vadd.f32 %v357, %v594
        %v596 = vpop.f32.mrf.mxu0
        %v597 = vpop.f32.mrf.mxu0
        %v598 = vadd.f32 %v357, %v597
        %v599 = vpop.f32.mrf.mxu0
        %600 = vmatprep.mubr.bf16.mxu0 0
        %601 = vmatmul.mubr.bf16.gmra.mxu0 %v486
        %v602 = vpop.f32.mrf.mxu0
        %v603 = vadd.f32 %v357, %v602
        %v604 = vpop.f32.mrf.mxu0
        %v605 = vpop.f32.mrf.mxu0
        %v606 = vadd.f32 %v357, %v605
        %v607 = vpop.f32.mrf.mxu0
        %608 = vmatprep.mubr.bf16.mxu0 0
        %609 = vmatmul.mubr.bf16.gmra.mxu0 %v489
        %v610 = vpop.f32.mrf.mxu0
        %v611 = vadd.f32 %v357, %v610
        %v612 = vpop.f32.mrf.mxu0
        %v613 = vpop.f32.mrf.mxu0
        %v614 = vadd.f32 %v357, %v613
        %v615 = vpop.f32.mrf.mxu0
        %616 = vmatprep.mubr.bf16.mxu0 0
        %617 = vmatmul.mubr.bf16.gmra.mxu0 %v492
        %v618 = vpop.f32.mrf.mxu0
        %v619 = vadd.f32 %v357, %v618
        %v620 = vpop.f32.mrf.mxu0
        %v621 = vpop.f32.mrf.mxu0
        %v622 = vadd.f32 %v357, %v621
        %v623 = vpop.f32.mrf.mxu0
        %624 = vmatprep.mubr.bf16.mxu0 0
        %625 = vmatmul.mubr.bf16.gmra.mxu0 %v495
        %v626 = vpop.f32.mrf.mxu0
        %v627 = vadd.f32 %v357, %v626
        %v628 = vpop.f32.mrf.mxu0
        %v629 = vpop.f32.mrf.mxu0
        %v630 = vadd.f32 %v357, %v629
        %v631 = vpop.f32.mrf.mxu0
        %632 = vmatprep.mubr.bf16.mxu0 0
        %633 = vmatmul.mubr.bf16.gmra.mxu0 %v498
        %v634 = vpop.f32.mrf.mxu0
        %v635 = vadd.f32 %v357, %v634
        %v636 = vpop.f32.mrf.mxu0
        %v637 = vpop.f32.mrf.mxu0
        %v638 = vadd.f32 %v357, %v637
        %v639 = vpop.f32.mrf.mxu0
        %640 = vmatprep.mubr.bf16.mxu0 0
        %641 = vmatmul.mubr.bf16.gmra.mxu0 %v501
        %v642 = vpop.f32.mrf.mxu0
        %v643 = vadd.f32 %v357, %v642
        %v644 = vpop.f32.mrf.mxu0
        %v645 = vpop.f32.mrf.mxu0
        %v646 = vadd.f32 %v357, %v645
        %v647 = vpop.f32.mrf.mxu0
        %648 = vmatprep.mubr.bf16.mxu0 0
        %649 = vmatmul.mubr.bf16.gmra.mxu0 %v504
        %v650 = vpop.f32.mrf.mxu0
        %v651 = vadd.f32 %v357, %v650
        %v652 = vpop.f32.mrf.mxu0
        %v653 = vpop.f32.mrf.mxu0
        %v654 = vadd.f32 %v357, %v653
        %v655 = vpop.f32.mrf.mxu0
        %656 = vmatprep.mubr.bf16.mxu0 0
        %657 = vmatmul.mubr.bf16.gmra.mxu0 %v507
        %v658 = vpop.f32.mrf.mxu0
        %v659 = vadd.f32 %v357, %v658
        %v660 = vpop.f32.mrf.mxu0
        %v661 = vpop.f32.mrf.mxu0
        %v662 = vadd.f32 %v357, %v661
        %v663 = vpop.f32.mrf.mxu0
        %664 = vmatprep.mubr.bf16.mxu0 0
        %665 = vmatmul.mubr.bf16.gmra.mxu0 %v510
        %v666 = vpop.f32.mrf.mxu0
        %v667 = vadd.f32 %v357, %v666
        %v668 = vpop.f32.mrf.mxu0
        %v669 = vpop.f32.mrf.mxu0
        %v670 = vadd.f32 %v357, %v669
        %v671 = vpop.f32.mrf.mxu0
        %672 = vdwg.mxu0
        %v673 = vmax.f32 %v547, 0.0
        %v674 = vmax.f32 %v550, 0.0
        %v675 = vmax.f32 %v555, 0.0
        %v676 = vmax.f32 %v558, 0.0
        %v677 = vmax.f32 %v563, 0.0
        %v678 = vmax.f32 %v566, 0.0
        %v679 = vmax.f32 %v571, 0.0
        %v680 = vmax.f32 %v574, 0.0
        %v681 = vmax.f32 %v579, 0.0
        %v682 = vmax.f32 %v582, 0.0
        %v683 = vmax.f32 %v587, 0.0
        %v684 = vmax.f32 %v590, 0.0
        %v685 = vmax.f32 %v595, 0.0
        %v686 = vmax.f32 %v598, 0.0
        %v687 = vmax.f32 %v603, 0.0
        %v688 = vmax.f32 %v606, 0.0
        %v689 = vmax.f32 %v611, 0.0
        %v690 = vmax.f32 %v614, 0.0
        %v691 = vmax.f32 %v619, 0.0
        %v692 = vmax.f32 %v622, 0.0
        %v693 = vmax.f32 %v627, 0.0
        %v694 = vmax.f32 %v630, 0.0
        %v695 = vmax.f32 %v635, 0.0
        %v696 = vmax.f32 %v638, 0.0
        %v697 = vmax.f32 %v643, 0.0
        %v698 = vmax.f32 %v646, 0.0
        %v699 = vmax.f32 %v651, 0.0
        %v700 = vmax.f32 %v654, 0.0
        %v701 = vmax.f32 %v659, 0.0
        %v702 = vmax.f32 %v662, 0.0
        %v703 = vmax.f32 %v667, 0.0
        %v704 = vmax.f32 %v670, 0.0
        %v705 = vpack.c.bf16 %v674, %v673
        %v706 = vpack.c.bf16 %v676, %v675
        %v707 = vpack.c.bf16 %v678, %v677
        %v708 = vpack.c.bf16 %v680, %v679
        %v709 = vpack.c.bf16 %v682, %v681
        %v710 = vpack.c.bf16 %v684, %v683
        %v711 = vpack.c.bf16 %v686, %v685
        %v712 = vpack.c.bf16 %v688, %v687
        %v713 = vpack.c.bf16 %v690, %v689
        %v714 = vpack.c.bf16 %v692, %v691
        %v715 = vpack.c.bf16 %v694, %v693
        %v716 = vpack.c.bf16 %v696, %v695
        %v717 = vpack.c.bf16 %v698, %v697
        %v718 = vpack.c.bf16 %v700, %v699
        %v719 = vpack.c.bf16 %v702, %v701
        %v720 = vpack.c.bf16 %v704, %v703
        %v721 = vld [vmem:[%s3] sm:$0xf]
        %v722 = vld [vmem:[%s3 + $0x4] sm:$0xf]
        %v723 = vld [vmem:[%s3 + $0x8] sm:$0xf]
        %v724 = vld [vmem:[%s3 + $0xc] sm:$0xf]
        %v725 = vld [vmem:[%s3 + $0x10] sm:$0xf]
        %v726 = vld [vmem:[%s3 + $0x14] sm:$0xf]
        %v727 = vld [vmem:[%s3 + $0x18] sm:$0xf]
        %v728 = vld [vmem:[%s3 + $0x1c] sm:$0xf]
        %v729 = vld [vmem:[%s3 + $0x20] sm:$0xf]
        %v730 = vld [vmem:[%s3 + $0x24] sm:$0xf]
        %v731 = vld [vmem:[%s3 + $0x28] sm:$0xf]
        %v732 = vld [vmem:[%s3 + $0x2c] sm:$0xf]
        %v733 = vld [vmem:[%s3 + $0x30] sm:$0xf]
        %v734 = vld [vmem:[%s3 + $0x34] sm:$0xf]
        %v735 = vld [vmem:[%s3 + $0x38] sm:$0xf]
        %v736 = vld [vmem:[%s3 + $0x3c] sm:$0xf]
        %v737 = vld [vmem:[#allocation2] sm:$0x1]
        %v739 = vlaneseq
        %v740 = vshrl.u32 %v739, 7
        %v741 = vsub.s32 0, %v740
        %v742 = vrot.slane %v737, %v741
        %v760 = vunpack.c.l.b16 %v721
        %v761 = vunpack.c.l.b16 %v722
        %v762 = vunpack.c.l.b16 %v723
        %v763 = vunpack.c.l.b16 %v724
        %v764 = vunpack.c.l.b16 %v725
        %v765 = vunpack.c.l.b16 %v726
        %v766 = vunpack.c.l.b16 %v727
        %v767 = vunpack.c.l.b16 %v728
        %v768 = vunpack.c.l.b16 %v729
        %v769 = vunpack.c.l.b16 %v730
        %v770 = vunpack.c.l.b16 %v731
        %v771 = vunpack.c.l.b16 %v732
        %v772 = vunpack.c.l.b16 %v733
        %v773 = vunpack.c.l.b16 %v734
        %v774 = vunpack.c.l.b16 %v735
        %v775 = vunpack.c.l.b16 %v736
        %v776 = vpack.c.b16 %v761, %v760
        %v777 = vpack.c.b16 %v763, %v762
        %v778 = vpack.c.b16 %v765, %v764
        %v779 = vpack.c.b16 %v767, %v766
        %v780 = vpack.c.b16 %v769, %v768
        %v781 = vpack.c.b16 %v771, %v770
        %v782 = vpack.c.b16 %v773, %v772
        %v783 = vpack.c.b16 %v775, %v774
        %792 = vmatprep.subr.bf16.mxu0 0
        %793 = vmatpush1.bf16.msra.mxu0 %v783
        %794 = vmatprep.subr.bf16.mxu0 0
        %795 = vmatpush1.bf16.msra.mxu0 %v782
        %796 = vmatprep.subr.bf16.mxu0 0
        %797 = vmatpush1.bf16.msra.mxu0 %v781
        %798 = vmatprep.subr.bf16.mxu0 0
        %799 = vmatpush1.bf16.msra.mxu0 %v780
        %800 = vmatprep.subr.bf16.mxu0 0
        %801 = vmatpush1.bf16.msra.mxu0 %v779
        %802 = vmatprep.subr.bf16.mxu0 0
        %803 = vmatpush1.bf16.msra.mxu0 %v778
        %804 = vmatprep.subr.bf16.mxu0 0
        %805 = vmatpush1.bf16.msra.mxu0 %v777
        %806 = vmatprep.subr.bf16.mxu0 0
        %807 = vmatpush1.bf16.msra.mxu0 %v776
        %808 = vmatprep.subr.bf16.mxu0 0
        %809 = vmatpush2.bf16.msra.mxu0 0
        %810 = vmatprep.subr.bf16.mxu0 0
        %811 = vmatpush2.bf16.msra.mxu0 0
        %812 = vmatprep.subr.bf16.mxu0 0
        %813 = vmatpush2.bf16.msra.mxu0 0
        %814 = vmatprep.subr.bf16.mxu0 0
        %815 = vmatpush2.bf16.msra.mxu0 0
        %816 = vmatprep.subr.bf16.mxu0 0
        %817 = vmatpush2.bf16.msra.mxu0 0
        %818 = vmatprep.subr.bf16.mxu0 0
        %819 = vmatpush2.bf16.msra.mxu0 0
        %820 = vmatprep.subr.bf16.mxu0 0
        %821 = vmatpush2.bf16.msra.mxu0 0
        %822 = vmatprep.subr.bf16.mxu0 0
        %823 = vmatpush2.bf16.msra.mxu0 0
        %824 = vmatprep.mubr.bf16.mxu0 0
        %825 = vmatmul.mubr.bf16.gmra.mxu0 %v705
        %v826 = vpop.f32.mrf.mxu0
        %v827 = vadd.f32 %v742, %v826
        %v828 = vpop.f32.mrf.mxu0
        %v829 = vpop.f32.mrf.mxu0
        %v830 = vadd.f32 %v742, %v829
        %v831 = vpop.f32.mrf.mxu0
        %832 = vmatprep.mubr.bf16.mxu0 0
        %833 = vmatmul.mubr.bf16.gmra.mxu0 %v706
        %v834 = vpop.f32.mrf.mxu0
        %v835 = vadd.f32 %v742, %v834
        %v836 = vpop.f32.mrf.mxu0
        %v837 = vpop.f32.mrf.mxu0
        %v838 = vadd.f32 %v742, %v837
        %v839 = vpop.f32.mrf.mxu0
        %840 = vmatprep.mubr.bf16.mxu0 0
        %841 = vmatmul.mubr.bf16.gmra.mxu0 %v707
        %v842 = vpop.f32.mrf.mxu0
        %v843 = vadd.f32 %v742, %v842
        %v844 = vpop.f32.mrf.mxu0
        %v845 = vpop.f32.mrf.mxu0
        %v846 = vadd.f32 %v742, %v845
        %v847 = vpop.f32.mrf.mxu0
        %848 = vmatprep.mubr.bf16.mxu0 0
        %849 = vmatmul.mubr.bf16.gmra.mxu0 %v708
        %v850 = vpop.f32.mrf.mxu0
        %v851 = vadd.f32 %v742, %v850
        %v852 = vpop.f32.mrf.mxu0
        %v853 = vpop.f32.mrf.mxu0
        %v854 = vadd.f32 %v742, %v853
        %v855 = vpop.f32.mrf.mxu0
        %856 = vmatprep.mubr.bf16.mxu0 0
        %857 = vmatmul.mubr.bf16.gmra.mxu0 %v709
        %v858 = vpop.f32.mrf.mxu0
        %v859 = vadd.f32 %v742, %v858
        %v860 = vpop.f32.mrf.mxu0
        %v861 = vpop.f32.mrf.mxu0
        %v862 = vadd.f32 %v742, %v861
        %v863 = vpop.f32.mrf.mxu0
        %864 = vmatprep.mubr.bf16.mxu0 0
        %865 = vmatmul.mubr.bf16.gmra.mxu0 %v710
        %v866 = vpop.f32.mrf.mxu0
        %v867 = vadd.f32 %v742, %v866
        %v868 = vpop.f32.mrf.mxu0
        %v869 = vpop.f32.mrf.mxu0
        %v870 = vadd.f32 %v742, %v869
        %v871 = vpop.f32.mrf.mxu0
        %872 = vmatprep.mubr.bf16.mxu0 0
        %873 = vmatmul.mubr.bf16.gmra.mxu0 %v711
        %v874 = vpop.f32.mrf.mxu0
        %v875 = vadd.f32 %v742, %v874
        %v876 = vpop.f32.mrf.mxu0
        %v877 = vpop.f32.mrf.mxu0
        %v878 = vadd.f32 %v742, %v877
        %v879 = vpop.f32.mrf.mxu0
        %880 = vmatprep.mubr.bf16.mxu0 0
        %881 = vmatmul.mubr.bf16.gmra.mxu0 %v712
        %v882 = vpop.f32.mrf.mxu0
        %v883 = vadd.f32 %v742, %v882
        %v884 = vpop.f32.mrf.mxu0
        %v885 = vpop.f32.mrf.mxu0
        %v886 = vadd.f32 %v742, %v885
        %v887 = vpop.f32.mrf.mxu0
        %888 = vmatprep.mubr.bf16.mxu0 0
        %889 = vmatmul.mubr.bf16.gmra.mxu0 %v713
        %v890 = vpop.f32.mrf.mxu0
        %v891 = vadd.f32 %v742, %v890
        %v892 = vpop.f32.mrf.mxu0
        %v893 = vpop.f32.mrf.mxu0
        %v894 = vadd.f32 %v742, %v893
        %v895 = vpop.f32.mrf.mxu0
        %896 = vmatprep.mubr.bf16.mxu0 0
        %897 = vmatmul.mubr.bf16.gmra.mxu0 %v714
        %v898 = vpop.f32.mrf.mxu0
        %v899 = vadd.f32 %v742, %v898
        %v900 = vpop.f32.mrf.mxu0
        %v901 = vpop.f32.mrf.mxu0
        %v902 = vadd.f32 %v742, %v901
        %v903 = vpop.f32.mrf.mxu0
        %904 = vmatprep.mubr.bf16.mxu0 0
        %905 = vmatmul.mubr.bf16.gmra.mxu0 %v715
        %v906 = vpop.f32.mrf.mxu0
        %v907 = vadd.f32 %v742, %v906
        %v908 = vpop.f32.mrf.mxu0
        %v909 = vpop.f32.mrf.mxu0
        %v910 = vadd.f32 %v742, %v909
        %v911 = vpop.f32.mrf.mxu0
        %912 = vmatprep.mubr.bf16.mxu0 0
        %913 = vmatmul.mubr.bf16.gmra.mxu0 %v716
        %v914 = vpop.f32.mrf.mxu0
        %v915 = vadd.f32 %v742, %v914
        %v916 = vpop.f32.mrf.mxu0
        %v917 = vpop.f32.mrf.mxu0
        %v918 = vadd.f32 %v742, %v917
        %v919 = vpop.f32.mrf.mxu0
        %920 = vmatprep.mubr.bf16.mxu0 0
        %921 = vmatmul.mubr.bf16.gmra.mxu0 %v717
        %v922 = vpop.f32.mrf.mxu0
        %v923 = vadd.f32 %v742, %v922
        %v924 = vpop.f32.mrf.mxu0
        %v925 = vpop.f32.mrf.mxu0
        %v926 = vadd.f32 %v742, %v925
        %v927 = vpop.f32.mrf.mxu0
        %928 = vmatprep.mubr.bf16.mxu0 0
        %929 = vmatmul.mubr.bf16.gmra.mxu0 %v718
        %v930 = vpop.f32.mrf.mxu0
        %v931 = vadd.f32 %v742, %v930
        %v932 = vpop.f32.mrf.mxu0
        %v933 = vpop.f32.mrf.mxu0
        %v934 = vadd.f32 %v742, %v933
        %v935 = vpop.f32.mrf.mxu0
        %936 = vmatprep.mubr.bf16.mxu0 0
        %937 = vmatmul.mubr.bf16.gmra.mxu0 %v719
        %v938 = vpop.f32.mrf.mxu0
        %v939 = vadd.f32 %v742, %v938
        %v940 = vpop.f32.mrf.mxu0
        %v941 = vpop.f32.mrf.mxu0
        %v942 = vadd.f32 %v742, %v941
        %v943 = vpop.f32.mrf.mxu0
        %944 = vmatprep.mubr.bf16.mxu0 0
        %945 = vmatmul.mubr.bf16.gmra.mxu0 %v720
        %v946 = vpop.f32.mrf.mxu0
        %v947 = vadd.f32 %v742, %v946
        %v948 = vpop.f32.mrf.mxu0
        %v949 = vpop.f32.mrf.mxu0
        %v950 = vadd.f32 %v742, %v949
        %v951 = vpop.f32.mrf.mxu0
        %952 = vdwg.mxu0
        %v953 = vmax.f32 %v827, 0.0
        %v954 = vmax.f32 %v830, 0.0
        %v955 = vmax.f32 %v835, 0.0
        %v956 = vmax.f32 %v838, 0.0
        %v957 = vmax.f32 %v843, 0.0
        %v958 = vmax.f32 %v846, 0.0
        %v959 = vmax.f32 %v851, 0.0
        %v960 = vmax.f32 %v854, 0.0
        %v961 = vmax.f32 %v859, 0.0
        %v962 = vmax.f32 %v862, 0.0
        %v963 = vmax.f32 %v867, 0.0
        %v964 = vmax.f32 %v870, 0.0
        %v965 = vmax.f32 %v875, 0.0
        %v966 = vmax.f32 %v878, 0.0
        %v967 = vmax.f32 %v883, 0.0
        %v968 = vmax.f32 %v886, 0.0
        %v969 = vmax.f32 %v891, 0.0
        %v970 = vmax.f32 %v894, 0.0
        %v971 = vmax.f32 %v899, 0.0
        %v972 = vmax.f32 %v902, 0.0
        %v973 = vmax.f32 %v907, 0.0
        %v974 = vmax.f32 %v910, 0.0
        %v975 = vmax.f32 %v915, 0.0
        %v976 = vmax.f32 %v918, 0.0
        %v977 = vmax.f32 %v923, 0.0
        %v978 = vmax.f32 %v926, 0.0
        %v979 = vmax.f32 %v931, 0.0
        %v980 = vmax.f32 %v934, 0.0
        %v981 = vmax.f32 %v939, 0.0
        %v982 = vmax.f32 %v942, 0.0
        %v983 = vmax.f32 %v947, 0.0
        %v984 = vmax.f32 %v950, 0.0
        %v985 = vpack.c.bf16 %v954, %v953
        %v986 = vpack.c.bf16 %v956, %v955
        %v987 = vpack.c.bf16 %v958, %v957
        %v988 = vpack.c.bf16 %v960, %v959
        %v989 = vpack.c.bf16 %v962, %v961
        %v990 = vpack.c.bf16 %v964, %v963
        %v991 = vpack.c.bf16 %v966, %v965
        %v992 = vpack.c.bf16 %v968, %v967
        %v993 = vpack.c.bf16 %v970, %v969
        %v994 = vpack.c.bf16 %v972, %v971
        %v995 = vpack.c.bf16 %v974, %v973
        %v996 = vpack.c.bf16 %v976, %v975
        %v997 = vpack.c.bf16 %v978, %v977
        %v998 = vpack.c.bf16 %v980, %v979
        %v999 = vpack.c.bf16 %v982, %v981
        %v1000 = vpack.c.bf16 %v984, %v983
        %v1001 = vld [vmem:[#allocation4] sm:$0xff]
        %v1002 = vld [vmem:[#allocation4 + $0x20] sm:$0xff]
        %v1003 = vld [vmem:[#allocation4 + $0x40] sm:$0xff]
        %v1004 = vld [vmem:[#allocation4 + $0x60] sm:$0xff]
        %v1005 = vld [vmem:[#allocation4 + $0x80] sm:$0xff]
        %v1006 = vld [vmem:[#allocation4 + $0xa0] sm:$0xff]
        %v1007 = vld [vmem:[#allocation4 + $0xc0] sm:$0xff]
        %v1008 = vld [vmem:[#allocation4 + $0xe0] sm:$0xff]
        %v1009 = vld [vmem:[#allocation4 + $0x100] sm:$0xff]
        %v1010 = vld [vmem:[#allocation4 + $0x120] sm:$0xff]
        %v1011 = vld [vmem:[#allocation4 + $0x140] sm:$0xff]
        %v1012 = vld [vmem:[#allocation4 + $0x160] sm:$0xff]
        %v1013 = vld [vmem:[#allocation4 + $0x180] sm:$0xff]
        %v1014 = vld [vmem:[#allocation4 + $0x1a0] sm:$0xff]
        %v1015 = vld [vmem:[#allocation4 + $0x1c0] sm:$0xff]
        %v1016 = vld [vmem:[#allocation4 + $0x1e0] sm:$0xff]
        %v1033 = vunpack.c.l.b16 %v1001
        %v1034 = vunpack.c.h.b16 %v1001
        %v1035 = vunpack.c.l.b16 %v1002
        %v1036 = vunpack.c.h.b16 %v1002
        %v1037 = vunpack.c.l.b16 %v1003
        %v1038 = vunpack.c.h.b16 %v1003
        %v1039 = vunpack.c.l.b16 %v1004
        %v1040 = vunpack.c.h.b16 %v1004
        %v1041 = vunpack.c.l.b16 %v1005
        %v1042 = vunpack.c.h.b16 %v1005
        %v1043 = vunpack.c.l.b16 %v1006
        %v1044 = vunpack.c.h.b16 %v1006
        %v1045 = vunpack.c.l.b16 %v1007
        %v1046 = vunpack.c.h.b16 %v1007
        %v1047 = vunpack.c.l.b16 %v1008
        %v1048 = vunpack.c.h.b16 %v1008
        %v1049 = vunpack.c.l.b16 %v1009
        %v1050 = vunpack.c.h.b16 %v1009
        %v1051 = vunpack.c.l.b16 %v1010
        %v1052 = vunpack.c.h.b16 %v1010
        %v1053 = vunpack.c.l.b16 %v1011
        %v1054 = vunpack.c.h.b16 %v1011
        %v1055 = vunpack.c.l.b16 %v1012
        %v1056 = vunpack.c.h.b16 %v1012
        %v1057 = vunpack.c.l.b16 %v1013
        %v1058 = vunpack.c.h.b16 %v1013
        %v1059 = vunpack.c.l.b16 %v1014
        %v1060 = vunpack.c.h.b16 %v1014
        %v1061 = vunpack.c.l.b16 %v1015
        %v1062 = vunpack.c.h.b16 %v1015
        %v1063 = vunpack.c.l.b16 %v1016
        %v1064 = vunpack.c.h.b16 %v1016
        %v1065 = vpack.c.b16 %v1035, %v1033
        %v1066 = vpack.c.b16 %v1036, %v1034
        %v1067 = vpack.c.b16 %v1039, %v1037
        %v1068 = vpack.c.b16 %v1040, %v1038
        %v1069 = vpack.c.b16 %v1043, %v1041
        %v1070 = vpack.c.b16 %v1044, %v1042
        %v1071 = vpack.c.b16 %v1047, %v1045
        %v1072 = vpack.c.b16 %v1048, %v1046
        %v1073 = vpack.c.b16 %v1051, %v1049
        %v1074 = vpack.c.b16 %v1052, %v1050
        %v1075 = vpack.c.b16 %v1055, %v1053
        %v1076 = vpack.c.b16 %v1056, %v1054
        %v1077 = vpack.c.b16 %v1059, %v1057
        %v1078 = vpack.c.b16 %v1060, %v1058
        %v1079 = vpack.c.b16 %v1063, %v1061
        %v1080 = vpack.c.b16 %v1064, %v1062
        %1097 = vmatprep.subr.bf16.mxu0 %v1080
        %1098 = vmatpush1.bf16.msra.mxu0 %v1079
        %1099 = vmatprep.subr.bf16.mxu0 %v1078
        %1100 = vmatpush1.bf16.msra.mxu0 %v1077
        %1101 = vmatprep.subr.bf16.mxu0 %v1076
        %1102 = vmatpush1.bf16.msra.mxu0 %v1075
        %1103 = vmatprep.subr.bf16.mxu0 %v1074
        %1104 = vmatpush1.bf16.msra.mxu0 %v1073
        %1105 = vmatprep.subr.bf16.mxu0 %v1072
        %1106 = vmatpush1.bf16.msra.mxu0 %v1071
        %1107 = vmatprep.subr.bf16.mxu0 %v1070
        %1108 = vmatpush1.bf16.msra.mxu0 %v1069
        %1109 = vmatprep.subr.bf16.mxu0 %v1068
        %1110 = vmatpush1.bf16.msra.mxu0 %v1067
        %1111 = vmatprep.subr.bf16.mxu0 %v1066
        %1112 = vmatpush1.bf16.msra.mxu0 %v1065
        %1113 = vmatprep.subr.bf16.mxu0 0
        %1114 = vmatpush2.bf16.msra.mxu0 0
        %1115 = vmatprep.subr.bf16.mxu0 0
        %1116 = vmatpush2.bf16.msra.mxu0 0
        %1117 = vmatprep.subr.bf16.mxu0 0
        %1118 = vmatpush2.bf16.msra.mxu0 0
        %1119 = vmatprep.subr.bf16.mxu0 0
        %1120 = vmatpush2.bf16.msra.mxu0 0
        %1121 = vmatprep.subr.bf16.mxu0 0
        %1122 = vmatpush2.bf16.msra.mxu0 0
        %1123 = vmatprep.subr.bf16.mxu0 0
        %1124 = vmatpush2.bf16.msra.mxu0 0
        %1125 = vmatprep.subr.bf16.mxu0 0
        %1126 = vmatpush2.bf16.msra.mxu0 0
        %1127 = vmatprep.subr.bf16.mxu0 0
        %1128 = vmatpush2.bf16.msra.mxu0 0
        %1129 = vmatprep.mubr.bf16.mxu0 0
        %1130 = vmatmul.mubr.bf16.gmra.mxu0 %v985
        %v1131 = vpop.f32.mrf.mxu0
        %v1132 = vadd.f32 0.0, %v1131
        %v1133 = vpop.f32.mrf.mxu0
        %v1134 = vadd.f32 0.0, %v1133
        %v1135 = vpop.f32.mrf.mxu0
        %v1136 = vadd.f32 0.0, %v1135
        %v1137 = vpop.f32.mrf.mxu0
        %v1138 = vadd.f32 0.0, %v1137
        %1139 = vmatprep.mubr.bf16.mxu0 0
        %1140 = vmatmul.mubr.bf16.gmra.mxu0 %v986
        %v1141 = vpop.f32.mrf.mxu0
        %v1142 = vadd.f32 0.0, %v1141
        %v1143 = vpop.f32.mrf.mxu0
        %v1144 = vadd.f32 0.0, %v1143
        %v1145 = vpop.f32.mrf.mxu0
        %v1146 = vadd.f32 0.0, %v1145
        %v1147 = vpop.f32.mrf.mxu0
        %v1148 = vadd.f32 0.0, %v1147
        %1149 = vmatprep.mubr.bf16.mxu0 0
        %1150 = vmatmul.mubr.bf16.gmra.mxu0 %v987
        %v1151 = vpop.f32.mrf.mxu0
        %v1152 = vadd.f32 0.0, %v1151
        %v1153 = vpop.f32.mrf.mxu0
        %v1154 = vadd.f32 0.0, %v1153
        %v1155 = vpop.f32.mrf.mxu0
        %v1156 = vadd.f32 0.0, %v1155
        %v1157 = vpop.f32.mrf.mxu0
        %v1158 = vadd.f32 0.0, %v1157
        %1159 = vmatprep.mubr.bf16.mxu0 0
        %1160 = vmatmul.mubr.bf16.gmra.mxu0 %v988
        %v1161 = vpop.f32.mrf.mxu0
        %v1162 = vadd.f32 0.0, %v1161
        %v1163 = vpop.f32.mrf.mxu0
        %v1164 = vadd.f32 0.0, %v1163
        %v1165 = vpop.f32.mrf.mxu0
        %v1166 = vadd.f32 0.0, %v1165
        %v1167 = vpop.f32.mrf.mxu0
        %v1168 = vadd.f32 0.0, %v1167
        %1169 = vmatprep.mubr.bf16.mxu0 0
        %1170 = vmatmul.mubr.bf16.gmra.mxu0 %v989
        %v1171 = vpop.f32.mrf.mxu0
        %v1172 = vadd.f32 0.0, %v1171
        %v1173 = vpop.f32.mrf.mxu0
        %v1174 = vadd.f32 0.0, %v1173
        %v1175 = vpop.f32.mrf.mxu0
        %v1176 = vadd.f32 0.0, %v1175
        %v1177 = vpop.f32.mrf.mxu0
        %v1178 = vadd.f32 0.0, %v1177
        %1179 = vmatprep.mubr.bf16.mxu0 0
        %1180 = vmatmul.mubr.bf16.gmra.mxu0 %v990
        %v1181 = vpop.f32.mrf.mxu0
        %v1182 = vadd.f32 0.0, %v1181
        %v1183 = vpop.f32.mrf.mxu0
        %v1184 = vadd.f32 0.0, %v1183
        %v1185 = vpop.f32.mrf.mxu0
        %v1186 = vadd.f32 0.0, %v1185
        %v1187 = vpop.f32.mrf.mxu0
        %v1188 = vadd.f32 0.0, %v1187
        %1189 = vmatprep.mubr.bf16.mxu0 0
        %1190 = vmatmul.mubr.bf16.gmra.mxu0 %v991
        %v1191 = vpop.f32.mrf.mxu0
        %v1192 = vadd.f32 0.0, %v1191
        %v1193 = vpop.f32.mrf.mxu0
        %v1194 = vadd.f32 0.0, %v1193
        %v1195 = vpop.f32.mrf.mxu0
        %v1196 = vadd.f32 0.0, %v1195
        %v1197 = vpop.f32.mrf.mxu0
        %v1198 = vadd.f32 0.0, %v1197
        %1199 = vmatprep.mubr.bf16.mxu0 0
        %1200 = vmatmul.mubr.bf16.gmra.mxu0 %v992
        %v1201 = vpop.f32.mrf.mxu0
        %v1202 = vadd.f32 0.0, %v1201
        %v1203 = vpop.f32.mrf.mxu0
        %v1204 = vadd.f32 0.0, %v1203
        %v1205 = vpop.f32.mrf.mxu0
        %v1206 = vadd.f32 0.0, %v1205
        %v1207 = vpop.f32.mrf.mxu0
        %v1208 = vadd.f32 0.0, %v1207
        %1209 = vmatprep.mubr.bf16.mxu0 0
        %1210 = vmatmul.mubr.bf16.gmra.mxu0 %v993
        %v1211 = vpop.f32.mrf.mxu0
        %v1212 = vadd.f32 0.0, %v1211
        %v1213 = vpop.f32.mrf.mxu0
        %v1214 = vadd.f32 0.0, %v1213
        %v1215 = vpop.f32.mrf.mxu0
        %v1216 = vadd.f32 0.0, %v1215
        %v1217 = vpop.f32.mrf.mxu0
        %v1218 = vadd.f32 0.0, %v1217
        %1219 = vmatprep.mubr.bf16.mxu0 0
        %1220 = vmatmul.mubr.bf16.gmra.mxu0 %v994
        %v1221 = vpop.f32.mrf.mxu0
        %v1222 = vadd.f32 0.0, %v1221
        %v1223 = vpop.f32.mrf.mxu0
        %v1224 = vadd.f32 0.0, %v1223
        %v1225 = vpop.f32.mrf.mxu0
        %v1226 = vadd.f32 0.0, %v1225
        %v1227 = vpop.f32.mrf.mxu0
        %v1228 = vadd.f32 0.0, %v1227
        %1229 = vmatprep.mubr.bf16.mxu0 0
        %1230 = vmatmul.mubr.bf16.gmra.mxu0 %v995
        %v1231 = vpop.f32.mrf.mxu0
        %v1232 = vadd.f32 0.0, %v1231
        %v1233 = vpop.f32.mrf.mxu0
        %v1234 = vadd.f32 0.0, %v1233
        %v1235 = vpop.f32.mrf.mxu0
        %v1236 = vadd.f32 0.0, %v1235
        %v1237 = vpop.f32.mrf.mxu0
        %v1238 = vadd.f32 0.0, %v1237
        %1239 = vmatprep.mubr.bf16.mxu0 0
        %1240 = vmatmul.mubr.bf16.gmra.mxu0 %v996
        %v1241 = vpop.f32.mrf.mxu0
        %v1242 = vadd.f32 0.0, %v1241
        %v1243 = vpop.f32.mrf.mxu0
        %v1244 = vadd.f32 0.0, %v1243
        %v1245 = vpop.f32.mrf.mxu0
        %v1246 = vadd.f32 0.0, %v1245
        %v1247 = vpop.f32.mrf.mxu0
        %v1248 = vadd.f32 0.0, %v1247
        %1249 = vmatprep.mubr.bf16.mxu0 0
        %1250 = vmatmul.mubr.bf16.gmra.mxu0 %v997
        %v1251 = vpop.f32.mrf.mxu0
        %v1252 = vadd.f32 0.0, %v1251
        %v1253 = vpop.f32.mrf.mxu0
        %v1254 = vadd.f32 0.0, %v1253
        %v1255 = vpop.f32.mrf.mxu0
        %v1256 = vadd.f32 0.0, %v1255
        %v1257 = vpop.f32.mrf.mxu0
        %v1258 = vadd.f32 0.0, %v1257
        %1259 = vmatprep.mubr.bf16.mxu0 0
        %1260 = vmatmul.mubr.bf16.gmra.mxu0 %v998
        %v1261 = vpop.f32.mrf.mxu0
        %v1262 = vadd.f32 0.0, %v1261
        %v1263 = vpop.f32.mrf.mxu0
        %v1264 = vadd.f32 0.0, %v1263
        %v1265 = vpop.f32.mrf.mxu0
        %v1266 = vadd.f32 0.0, %v1265
        %v1267 = vpop.f32.mrf.mxu0
        %v1268 = vadd.f32 0.0, %v1267
        %1269 = vmatprep.mubr.bf16.mxu0 0
        %1270 = vmatmul.mubr.bf16.gmra.mxu0 %v999
        %v1271 = vpop.f32.mrf.mxu0
        %v1272 = vadd.f32 0.0, %v1271
        %v1273 = vpop.f32.mrf.mxu0
        %v1274 = vadd.f32 0.0, %v1273
        %v1275 = vpop.f32.mrf.mxu0
        %v1276 = vadd.f32 0.0, %v1275
        %v1277 = vpop.f32.mrf.mxu0
        %v1278 = vadd.f32 0.0, %v1277
        %1279 = vmatprep.mubr.bf16.mxu0 0
        %1280 = vmatmul.mubr.bf16.gmra.mxu0 %v1000
        %v1281 = vpop.f32.mrf.mxu0
        %v1282 = vadd.f32 0.0, %v1281
        %v1283 = vpop.f32.mrf.mxu0
        %v1284 = vadd.f32 0.0, %v1283
        %v1285 = vpop.f32.mrf.mxu0
        %v1286 = vadd.f32 0.0, %v1285
        %v1287 = vpop.f32.mrf.mxu0
        %v1288 = vadd.f32 0.0, %v1287
        %1289 = vdwg.mxu0
        %v1290 = vmax.f32 %v1132, %v1142
        %v1291 = vmax.f32 %v1136, %v1146
        %v1292 = vmax.f32 %v1290, %v1152
        %v1293 = vmax.f32 %v1291, %v1156
        %v1294 = vmax.f32 %v1292, %v1162
        %v1295 = vmax.f32 %v1293, %v1166
        %v1296 = vmax.f32 %v1294, %v1172
        %v1297 = vmax.f32 %v1295, %v1176
        %v1298 = vmax.f32 %v1296, %v1182
        %v1299 = vmax.f32 %v1297, %v1186
        %v1300 = vmax.f32 %v1298, %v1192
        %v1301 = vmax.f32 %v1299, %v1196
        %v1302 = vmax.f32 %v1300, %v1202
        %v1303 = vmax.f32 %v1301, %v1206
        %v1304 = vmax.f32 %v1302, %v1212
        %v1305 = vmax.f32 %v1303, %v1216
        %v1306 = vmax.f32 %v1304, %v1222
        %v1307 = vmax.f32 %v1305, %v1226
        %v1308 = vmax.f32 %v1306, %v1232
        %v1309 = vmax.f32 %v1307, %v1236
        %v1310 = vmax.f32 %v1308, %v1242
        %v1311 = vmax.f32 %v1309, %v1246
        %v1312 = vmax.f32 %v1310, %v1252
        %v1313 = vmax.f32 %v1311, %v1256
        %v1314 = vmax.f32 %v1312, %v1262
        %v1315 = vmax.f32 %v1313, %v1266
        %v1316 = vmax.f32 %v1314, %v1272
        %v1317 = vmax.f32 %v1315, %v1276
        %v1318 = vmax.f32 %v1316, %v1282
        %v1319 = vmax.f32 %v1317, %v1286
        %v1320 = vmax.f32 %v1318, %v1319
        %v1321 = vrot.slane %v1320, 4
        %v1322 = vmax.f32 %v1320, %v1321
        %v1323 = vrot.slane %v1322, 2
        %v1324 = vmax.f32 %v1322, %v1323
        %v1325 = vrot.slane %v1324, 1
        %v1326 = vmax.f32 %v1324, %v1325
        %v1327 = vmax.f32 %v1134, %v1144
        %v1328 = vmax.f32 %v1138, %v1148
        %v1329 = vmax.f32 %v1327, %v1154
        %v1330 = vmax.f32 %v1328, %v1158
        %v1331 = vmax.f32 %v1329, %v1164
        %v1332 = vmax.f32 %v1330, %v1168
        %v1333 = vmax.f32 %v1331, %v1174
        %v1334 = vmax.f32 %v1332, %v1178
        %v1335 = vmax.f32 %v1333, %v1184
        %v1336 = vmax.f32 %v1334, %v1188
        %v1337 = vmax.f32 %v1335, %v1194
        %v1338 = vmax.f32 %v1336, %v1198
        %v1339 = vmax.f32 %v1337, %v1204
        %v1340 = vmax.f32 %v1338, %v1208
        %v1341 = vmax.f32 %v1339, %v1214
        %v1342 = vmax.f32 %v1340, %v1218
        %v1343 = vmax.f32 %v1341, %v1224
        %v1344 = vmax.f32 %v1342, %v1228
        %v1345 = vmax.f32 %v1343, %v1234
        %v1346 = vmax.f32 %v1344, %v1238
        %v1347 = vmax.f32 %v1345, %v1244
        %v1348 = vmax.f32 %v1346, %v1248
        %v1349 = vmax.f32 %v1347, %v1254
        %v1350 = vmax.f32 %v1348, %v1258
        %v1351 = vmax.f32 %v1349, %v1264
        %v1352 = vmax.f32 %v1350, %v1268
        %v1353 = vmax.f32 %v1351, %v1274
        %v1354 = vmax.f32 %v1352, %v1278
        %v1355 = vmax.f32 %v1353, %v1284
        %v1356 = vmax.f32 %v1354, %v1288
        %v1357 = vmax.f32 %v1355, %v1356
        %v1358 = vrot.slane %v1357, 4
        %v1359 = vmax.f32 %v1357, %v1358
        %v1360 = vrot.slane %v1359, 2
        %v1361 = vmax.f32 %v1359, %v1360
        %v1362 = vrot.slane %v1361, 1
        %v1363 = vmax.f32 %v1361, %v1362
        %v1364 = vld [vmem:[%s305] sm:$0x3]
        %v1367 = vcombine.low %v1326, %v1363
        %v1369 = vunpack.c.l.s4 1966171168
        %v1370 = vunpack.c.0.s8 %v1369
        %v1371 = vlaneseq
        %v1372 = vshrl.u32 %v1371, 7
        %v1373 = vsub.s32 %v1370, %v1372
        %v1374 = vrot.slane %v1367, %v1373
        %v1376 = vunpack.c.l.s4 1966171168
        %v1377 = vunpack.c.0.s8 %v1376
        %v1378 = vlaneseq
        %v1379 = vshrl.u32 %v1378, 7
        %v1380 = vsub.s32 %v1377, %v1379
        %v1381 = vrot.slane %v1374, %v1380
        %v1383 = vmax.f32 %v1364, %v1381
        %v1384 = vlaneseq
        %vm1385 = vcmp.ge.s32.totalorder %v1384, 0
        %vm1386 = vcmp.lt.s32.totalorder %v1384, 256
        %vm1387 = vmand %vm1385, %vm1386
        %1388 = vst.msk [vmem:[%s305] sm:$0x3] %vm1387, %v1383
        %v1389 = vld [vmem:[#allocation4 + $0x8] sm:$0xff]
        %v1390 = vld [vmem:[#allocation4 + $0x28] sm:$0xff]
        %v1391 = vld [vmem:[#allocation4 + $0x48] sm:$0xff]
        %v1392 = vld [vmem:[#allocation4 + $0x68] sm:$0xff]
        %v1393 = vld [vmem:[#allocation4 + $0x88] sm:$0xff]
        %v1394 = vld [vmem:[#allocation4 + $0xa8] sm:$0xff]
        %v1395 = vld [vmem:[#allocation4 + $0xc8] sm:$0xff]
        %v1396 = vld [vmem:[#allocation4 + $0xe8] sm:$0xff]
        %v1397 = vld [vmem:[#allocation4 + $0x108] sm:$0xff]
        %v1398 = vld [vmem:[#allocation4 + $0x128] sm:$0xff]
        %v1399 = vld [vmem:[#allocation4 + $0x148] sm:$0xff]
        %v1400 = vld [vmem:[#allocation4 + $0x168] sm:$0xff]
        %v1401 = vld [vmem:[#allocation4 + $0x188] sm:$0xff]
        %v1402 = vld [vmem:[#allocation4 + $0x1a8] sm:$0xff]
        %v1403 = vld [vmem:[#allocation4 + $0x1c8] sm:$0xff]
        %v1404 = vld [vmem:[#allocation4 + $0x1e8] sm:$0xff]
        %v1421 = vunpack.c.l.b16 %v1389
        %v1422 = vunpack.c.h.b16 %v1389
        %v1423 = vunpack.c.l.b16 %v1390
        %v1424 = vunpack.c.h.b16 %v1390
        %v1425 = vunpack.c.l.b16 %v1391
        %v1426 = vunpack.c.h.b16 %v1391
        %v1427 = vunpack.c.l.b16 %v1392
        %v1428 = vunpack.c.h.b16 %v1392
        %v1429 = vunpack.c.l.b16 %v1393
        %v1430 = vunpack.c.h.b16 %v1393
        %v1431 = vunpack.c.l.b16 %v1394
        %v1432 = vunpack.c.h.b16 %v1394
        %v1433 = vunpack.c.l.b16 %v1395
        %v1434 = vunpack.c.h.b16 %v1395
        %v1435 = vunpack.c.l.b16 %v1396
        %v1436 = vunpack.c.h.b16 %v1396
        %v1437 = vunpack.c.l.b16 %v1397
        %v1438 = vunpack.c.h.b16 %v1397
        %v1439 = vunpack.c.l.b16 %v1398
        %v1440 = vunpack.c.h.b16 %v1398
        %v1441 = vunpack.c.l.b16 %v1399
        %v1442 = vunpack.c.h.b16 %v1399
        %v1443 = vunpack.c.l.b16 %v1400
        %v1444 = vunpack.c.h.b16 %v1400
        %v1445 = vunpack.c.l.b16 %v1401
        %v1446 = vunpack.c.h.b16 %v1401
        %v1447 = vunpack.c.l.b16 %v1402
        %v1448 = vunpack.c.h.b16 %v1402
        %v1449 = vunpack.c.l.b16 %v1403
        %v1450 = vunpack.c.h.b16 %v1403
        %v1451 = vunpack.c.l.b16 %v1404
        %v1452 = vunpack.c.h.b16 %v1404
        %v1453 = vpack.c.b16 %v1423, %v1421
        %v1454 = vpack.c.b16 %v1424, %v1422
        %v1455 = vpack.c.b16 %v1427, %v1425
        %v1456 = vpack.c.b16 %v1428, %v1426
        %v1457 = vpack.c.b16 %v1431, %v1429
        %v1458 = vpack.c.b16 %v1432, %v1430
        %v1459 = vpack.c.b16 %v1435, %v1433
        %v1460 = vpack.c.b16 %v1436, %v1434
        %v1461 = vpack.c.b16 %v1439, %v1437
        %v1462 = vpack.c.b16 %v1440, %v1438
        %v1463 = vpack.c.b16 %v1443, %v1441
        %v1464 = vpack.c.b16 %v1444, %v1442
        %v1465 = vpack.c.b16 %v1447, %v1445
        %v1466 = vpack.c.b16 %v1448, %v1446
        %v1467 = vpack.c.b16 %v1451, %v1449
        %v1468 = vpack.c.b16 %v1452, %v1450
        %1485 = vmatprep.subr.bf16.mxu0 %v1468
        %1486 = vmatpush1.bf16.msra.mxu0 %v1467
        %1487 = vmatprep.subr.bf16.mxu0 %v1466
        %1488 = vmatpush1.bf16.msra.mxu0 %v1465
        %1489 = vmatprep.subr.bf16.mxu0 %v1464
        %1490 = vmatpush1.bf16.msra.mxu0 %v1463
        %1491 = vmatprep.subr.bf16.mxu0 %v1462
        %1492 = vmatpush1.bf16.msra.mxu0 %v1461
        %1493 = vmatprep.subr.bf16.mxu0 %v1460
        %1494 = vmatpush1.bf16.msra.mxu0 %v1459
        %1495 = vmatprep.subr.bf16.mxu0 %v1458
        %1496 = vmatpush1.bf16.msra.mxu0 %v1457
        %1497 = vmatprep.subr.bf16.mxu0 %v1456
        %1498 = vmatpush1.bf16.msra.mxu0 %v1455
        %1499 = vmatprep.subr.bf16.mxu0 %v1454
        %1500 = vmatpush1.bf16.msra.mxu0 %v1453
        %1501 = vmatprep.subr.bf16.mxu0 0
        %1502 = vmatpush2.bf16.msra.mxu0 0
        %1503 = vmatprep.subr.bf16.mxu0 0
        %1504 = vmatpush2.bf16.msra.mxu0 0
        %1505 = vmatprep.subr.bf16.mxu0 0
        %1506 = vmatpush2.bf16.msra.mxu0 0
        %1507 = vmatprep.subr.bf16.mxu0 0
        %1508 = vmatpush2.bf16.msra.mxu0 0
        %1509 = vmatprep.subr.bf16.mxu0 0
        %1510 = vmatpush2.bf16.msra.mxu0 0
        %1511 = vmatprep.subr.bf16.mxu0 0
        %1512 = vmatpush2.bf16.msra.mxu0 0
        %1513 = vmatprep.subr.bf16.mxu0 0
        %1514 = vmatpush2.bf16.msra.mxu0 0
        %1515 = vmatprep.subr.bf16.mxu0 0
        %1516 = vmatpush2.bf16.msra.mxu0 0
        %1517 = vmatprep.mubr.bf16.mxu0 0
        %1518 = vmatmul.mubr.bf16.gmra.mxu0 %v985
        %v1519 = vpop.f32.mrf.mxu0
        %v1520 = vadd.f32 0.0, %v1519
        %v1521 = vpop.f32.mrf.mxu0
        %v1522 = vadd.f32 0.0, %v1521
        %v1523 = vpop.f32.mrf.mxu0
        %v1524 = vadd.f32 0.0, %v1523
        %v1525 = vpop.f32.mrf.mxu0
        %v1526 = vadd.f32 0.0, %v1525
        %1527 = vmatprep.mubr.bf16.mxu0 0
        %1528 = vmatmul.mubr.bf16.gmra.mxu0 %v986
        %v1529 = vpop.f32.mrf.mxu0
        %v1530 = vadd.f32 0.0, %v1529
        %v1531 = vpop.f32.mrf.mxu0
        %v1532 = vadd.f32 0.0, %v1531
        %v1533 = vpop.f32.mrf.mxu0
        %v1534 = vadd.f32 0.0, %v1533
        %v1535 = vpop.f32.mrf.mxu0
        %v1536 = vadd.f32 0.0, %v1535
        %1537 = vmatprep.mubr.bf16.mxu0 0
        %1538 = vmatmul.mubr.bf16.gmra.mxu0 %v987
        %v1539 = vpop.f32.mrf.mxu0
        %v1540 = vadd.f32 0.0, %v1539
        %v1541 = vpop.f32.mrf.mxu0
        %v1542 = vadd.f32 0.0, %v1541
        %v1543 = vpop.f32.mrf.mxu0
        %v1544 = vadd.f32 0.0, %v1543
        %v1545 = vpop.f32.mrf.mxu0
        %v1546 = vadd.f32 0.0, %v1545
        %1547 = vmatprep.mubr.bf16.mxu0 0
        %1548 = vmatmul.mubr.bf16.gmra.mxu0 %v988
        %v1549 = vpop.f32.mrf.mxu0
        %v1550 = vadd.f32 0.0, %v1549
        %v1551 = vpop.f32.mrf.mxu0
        %v1552 = vadd.f32 0.0, %v1551
        %v1553 = vpop.f32.mrf.mxu0
        %v1554 = vadd.f32 0.0, %v1553
        %v1555 = vpop.f32.mrf.mxu0
        %v1556 = vadd.f32 0.0, %v1555
        %1557 = vmatprep.mubr.bf16.mxu0 0
        %1558 = vmatmul.mubr.bf16.gmra.mxu0 %v989
        %v1559 = vpop.f32.mrf.mxu0
        %v1560 = vadd.f32 0.0, %v1559
        %v1561 = vpop.f32.mrf.mxu0
        %v1562 = vadd.f32 0.0, %v1561
        %v1563 = vpop.f32.mrf.mxu0
        %v1564 = vadd.f32 0.0, %v1563
        %v1565 = vpop.f32.mrf.mxu0
        %v1566 = vadd.f32 0.0, %v1565
        %1567 = vmatprep.mubr.bf16.mxu0 0
        %1568 = vmatmul.mubr.bf16.gmra.mxu0 %v990
        %v1569 = vpop.f32.mrf.mxu0
        %v1570 = vadd.f32 0.0, %v1569
        %v1571 = vpop.f32.mrf.mxu0
        %v1572 = vadd.f32 0.0, %v1571
        %v1573 = vpop.f32.mrf.mxu0
        %v1574 = vadd.f32 0.0, %v1573
        %v1575 = vpop.f32.mrf.mxu0
        %v1576 = vadd.f32 0.0, %v1575
        %1577 = vmatprep.mubr.bf16.mxu0 0
        %1578 = vmatmul.mubr.bf16.gmra.mxu0 %v991
        %v1579 = vpop.f32.mrf.mxu0
        %v1580 = vadd.f32 0.0, %v1579
        %v1581 = vpop.f32.mrf.mxu0
        %v1582 = vadd.f32 0.0, %v1581
        %v1583 = vpop.f32.mrf.mxu0
        %v1584 = vadd.f32 0.0, %v1583
        %v1585 = vpop.f32.mrf.mxu0
        %v1586 = vadd.f32 0.0, %v1585
        %1587 = vmatprep.mubr.bf16.mxu0 0
        %1588 = vmatmul.mubr.bf16.gmra.mxu0 %v992
        %v1589 = vpop.f32.mrf.mxu0
        %v1590 = vadd.f32 0.0, %v1589
        %v1591 = vpop.f32.mrf.mxu0
        %v1592 = vadd.f32 0.0, %v1591
        %v1593 = vpop.f32.mrf.mxu0
        %v1594 = vadd.f32 0.0, %v1593
        %v1595 = vpop.f32.mrf.mxu0
        %v1596 = vadd.f32 0.0, %v1595
        %1597 = vmatprep.mubr.bf16.mxu0 0
        %1598 = vmatmul.mubr.bf16.gmra.mxu0 %v993
        %v1599 = vpop.f32.mrf.mxu0
        %v1600 = vadd.f32 0.0, %v1599
        %v1601 = vpop.f32.mrf.mxu0
        %v1602 = vadd.f32 0.0, %v1601
        %v1603 = vpop.f32.mrf.mxu0
        %v1604 = vadd.f32 0.0, %v1603
        %v1605 = vpop.f32.mrf.mxu0
        %v1606 = vadd.f32 0.0, %v1605
        %1607 = vmatprep.mubr.bf16.mxu0 0
        %1608 = vmatmul.mubr.bf16.gmra.mxu0 %v994
        %v1609 = vpop.f32.mrf.mxu0
        %v1610 = vadd.f32 0.0, %v1609
        %v1611 = vpop.f32.mrf.mxu0
        %v1612 = vadd.f32 0.0, %v1611
        %v1613 = vpop.f32.mrf.mxu0
        %v1614 = vadd.f32 0.0, %v1613
        %v1615 = vpop.f32.mrf.mxu0
        %v1616 = vadd.f32 0.0, %v1615
        %1617 = vmatprep.mubr.bf16.mxu0 0
        %1618 = vmatmul.mubr.bf16.gmra.mxu0 %v995
        %v1619 = vpop.f32.mrf.mxu0
        %v1620 = vadd.f32 0.0, %v1619
        %v1621 = vpop.f32.mrf.mxu0
        %v1622 = vadd.f32 0.0, %v1621
        %v1623 = vpop.f32.mrf.mxu0
        %v1624 = vadd.f32 0.0, %v1623
        %v1625 = vpop.f32.mrf.mxu0
        %v1626 = vadd.f32 0.0, %v1625
        %1627 = vmatprep.mubr.bf16.mxu0 0
        %1628 = vmatmul.mubr.bf16.gmra.mxu0 %v996
        %v1629 = vpop.f32.mrf.mxu0
        %v1630 = vadd.f32 0.0, %v1629
        %v1631 = vpop.f32.mrf.mxu0
        %v1632 = vadd.f32 0.0, %v1631
        %v1633 = vpop.f32.mrf.mxu0
        %v1634 = vadd.f32 0.0, %v1633
        %v1635 = vpop.f32.mrf.mxu0
        %v1636 = vadd.f32 0.0, %v1635
        %1637 = vmatprep.mubr.bf16.mxu0 0
        %1638 = vmatmul.mubr.bf16.gmra.mxu0 %v997
        %v1639 = vpop.f32.mrf.mxu0
        %v1640 = vadd.f32 0.0, %v1639
        %v1641 = vpop.f32.mrf.mxu0
        %v1642 = vadd.f32 0.0, %v1641
        %v1643 = vpop.f32.mrf.mxu0
        %v1644 = vadd.f32 0.0, %v1643
        %v1645 = vpop.f32.mrf.mxu0
        %v1646 = vadd.f32 0.0, %v1645
        %1647 = vmatprep.mubr.bf16.mxu0 0
        %1648 = vmatmul.mubr.bf16.gmra.mxu0 %v998
        %v1649 = vpop.f32.mrf.mxu0
        %v1650 = vadd.f32 0.0, %v1649
        %v1651 = vpop.f32.mrf.mxu0
        %v1652 = vadd.f32 0.0, %v1651
        %v1653 = vpop.f32.mrf.mxu0
        %v1654 = vadd.f32 0.0, %v1653
        %v1655 = vpop.f32.mrf.mxu0
        %v1656 = vadd.f32 0.0, %v1655
        %1657 = vmatprep.mubr.bf16.mxu0 0
        %1658 = vmatmul.mubr.bf16.gmra.mxu0 %v999
        %v1659 = vpop.f32.mrf.mxu0
        %v1660 = vadd.f32 0.0, %v1659
        %v1661 = vpop.f32.mrf.mxu0
        %v1662 = vadd.f32 0.0, %v1661
        %v1663 = vpop.f32.mrf.mxu0
        %v1664 = vadd.f32 0.0, %v1663
        %v1665 = vpop.f32.mrf.mxu0
        %v1666 = vadd.f32 0.0, %v1665
        %1667 = vmatprep.mubr.bf16.mxu0 0
        %1668 = vmatmul.mubr.bf16.gmra.mxu0 %v1000
        %v1669 = vpop.f32.mrf.mxu0
        %v1670 = vadd.f32 0.0, %v1669
        %v1671 = vpop.f32.mrf.mxu0
        %v1672 = vadd.f32 0.0, %v1671
        %v1673 = vpop.f32.mrf.mxu0
        %v1674 = vadd.f32 0.0, %v1673
        %v1675 = vpop.f32.mrf.mxu0
        %v1676 = vadd.f32 0.0, %v1675
        %1677 = vdwg.mxu0
        %v1678 = vmax.f32 %v1520, %v1530
        %v1679 = vmax.f32 %v1524, %v1534
        %v1680 = vmax.f32 %v1678, %v1540
        %v1681 = vmax.f32 %v1679, %v1544
        %v1682 = vmax.f32 %v1680, %v1550
        %v1683 = vmax.f32 %v1681, %v1554
        %v1684 = vmax.f32 %v1682, %v1560
        %v1685 = vmax.f32 %v1683, %v1564
        %v1686 = vmax.f32 %v1684, %v1570
        %v1687 = vmax.f32 %v1685, %v1574
        %v1688 = vmax.f32 %v1686, %v1580
        %v1689 = vmax.f32 %v1687, %v1584
        %v1690 = vmax.f32 %v1688, %v1590
        %v1691 = vmax.f32 %v1689, %v1594
        %v1692 = vmax.f32 %v1690, %v1600
        %v1693 = vmax.f32 %v1691, %v1604
        %v1694 = vmax.f32 %v1692, %v1610
        %v1695 = vmax.f32 %v1693, %v1614
        %v1696 = vmax.f32 %v1694, %v1620
        %v1697 = vmax.f32 %v1695, %v1624
        %v1698 = vmax.f32 %v1696, %v1630
        %v1699 = vmax.f32 %v1697, %v1634
        %v1700 = vmax.f32 %v1698, %v1640
        %v1701 = vmax.f32 %v1699, %v1644
        %v1702 = vmax.f32 %v1700, %v1650
        %v1703 = vmax.f32 %v1701, %v1654
        %v1704 = vmax.f32 %v1702, %v1660
        %v1705 = vmax.f32 %v1703, %v1664
        %v1706 = vmax.f32 %v1704, %v1670
        %v1707 = vmax.f32 %v1705, %v1674
        %v1708 = vmax.f32 %v1706, %v1707
        %v1709 = vrot.slane %v1708, 4
        %v1710 = vmax.f32 %v1708, %v1709
        %v1711 = vrot.slane %v1710, 2
        %v1712 = vmax.f32 %v1710, %v1711
        %v1713 = vrot.slane %v1712, 1
        %v1714 = vmax.f32 %v1712, %v1713
        %v1715 = vmax.f32 %v1522, %v1532
        %v1716 = vmax.f32 %v1526, %v1536
        %v1717 = vmax.f32 %v1715, %v1542
        %v1718 = vmax.f32 %v1716, %v1546
        %v1719 = vmax.f32 %v1717, %v1552
        %v1720 = vmax.f32 %v1718, %v1556
        %v1721 = vmax.f32 %v1719, %v1562
        %v1722 = vmax.f32 %v1720, %v1566
        %v1723 = vmax.f32 %v1721, %v1572
        %v1724 = vmax.f32 %v1722, %v1576
        %v1725 = vmax.f32 %v1723, %v1582
        %v1726 = vmax.f32 %v1724, %v1586
        %v1727 = vmax.f32 %v1725, %v1592
        %v1728 = vmax.f32 %v1726, %v1596
        %v1729 = vmax.f32 %v1727, %v1602
        %v1730 = vmax.f32 %v1728, %v1606
        %v1731 = vmax.f32 %v1729, %v1612
        %v1732 = vmax.f32 %v1730, %v1616
        %v1733 = vmax.f32 %v1731, %v1622
        %v1734 = vmax.f32 %v1732, %v1626
        %v1735 = vmax.f32 %v1733, %v1632
        %v1736 = vmax.f32 %v1734, %v1636
        %v1737 = vmax.f32 %v1735, %v1642
        %v1738 = vmax.f32 %v1736, %v1646
        %v1739 = vmax.f32 %v1737, %v1652
        %v1740 = vmax.f32 %v1738, %v1656
        %v1741 = vmax.f32 %v1739, %v1662
        %v1742 = vmax.f32 %v1740, %v1666
        %v1743 = vmax.f32 %v1741, %v1672
        %v1744 = vmax.f32 %v1742, %v1676
        %v1745 = vmax.f32 %v1743, %v1744
        %v1746 = vrot.slane %v1745, 4
        %v1747 = vmax.f32 %v1745, %v1746
        %v1748 = vrot.slane %v1747, 2
        %v1749 = vmax.f32 %v1747, %v1748
        %v1750 = vrot.slane %v1749, 1
        %v1751 = vmax.f32 %v1749, %v1750
        %v1752 = vld [vmem:[%s305 + $0x2] sm:$0x3]
        %v1755 = vcombine.low %v1714, %v1751
        %v1757 = vunpack.c.l.s4 1966171168
        %v1758 = vunpack.c.0.s8 %v1757
        %v1759 = vlaneseq
        %v1760 = vshrl.u32 %v1759, 7
        %v1761 = vsub.s32 %v1758, %v1760
        %v1762 = vrot.slane %v1755, %v1761
        %v1764 = vunpack.c.l.s4 1966171168
        %v1765 = vunpack.c.0.s8 %v1764
        %v1766 = vlaneseq
        %v1767 = vshrl.u32 %v1766, 7
        %v1768 = vsub.s32 %v1765, %v1767
        %v1769 = vrot.slane %v1762, %v1768
        %v1771 = vmax.f32 %v1752, %v1769
        %1772 = vst.msk [vmem:[%s305 + $0x2] sm:$0x3] %vm1387, %v1771
        %v1773 = vld [vmem:[#allocation4 + $0x10] sm:$0xff]
        %v1774 = vld [vmem:[#allocation4 + $0x30] sm:$0xff]
        %v1775 = vld [vmem:[#allocation4 + $0x50] sm:$0xff]
        %v1776 = vld [vmem:[#allocation4 + $0x70] sm:$0xff]
        %v1777 = vld [vmem:[#allocation4 + $0x90] sm:$0xff]
        %v1778 = vld [vmem:[#allocation4 + $0xb0] sm:$0xff]
        %v1779 = vld [vmem:[#allocation4 + $0xd0] sm:$0xff]
        %v1780 = vld [vmem:[#allocation4 + $0xf0] sm:$0xff]
        %v1781 = vld [vmem:[#allocation4 + $0x110] sm:$0xff]
        %v1782 = vld [vmem:[#allocation4 + $0x130] sm:$0xff]
        %v1783 = vld [vmem:[#allocation4 + $0x150] sm:$0xff]
        %v1784 = vld [vmem:[#allocation4 + $0x170] sm:$0xff]
        %v1785 = vld [vmem:[#allocation4 + $0x190] sm:$0xff]
        %v1786 = vld [vmem:[#allocation4 + $0x1b0] sm:$0xff]
        %v1787 = vld [vmem:[#allocation4 + $0x1d0] sm:$0xff]
        %v1788 = vld [vmem:[#allocation4 + $0x1f0] sm:$0xff]
        %v1805 = vunpack.c.l.b16 %v1773
        %v1806 = vunpack.c.h.b16 %v1773
        %v1807 = vunpack.c.l.b16 %v1774
        %v1808 = vunpack.c.h.b16 %v1774
        %v1809 = vunpack.c.l.b16 %v1775
        %v1810 = vunpack.c.h.b16 %v1775
        %v1811 = vunpack.c.l.b16 %v1776
        %v1812 = vunpack.c.h.b16 %v1776
        %v1813 = vunpack.c.l.b16 %v1777
        %v1814 = vunpack.c.h.b16 %v1777
        %v1815 = vunpack.c.l.b16 %v1778
        %v1816 = vunpack.c.h.b16 %v1778
        %v1817 = vunpack.c.l.b16 %v1779
        %v1818 = vunpack.c.h.b16 %v1779
        %v1819 = vunpack.c.l.b16 %v1780
        %v1820 = vunpack.c.h.b16 %v1780
        %v1821 = vunpack.c.l.b16 %v1781
        %v1822 = vunpack.c.h.b16 %v1781
        %v1823 = vunpack.c.l.b16 %v1782
        %v1824 = vunpack.c.h.b16 %v1782
        %v1825 = vunpack.c.l.b16 %v1783
        %v1826 = vunpack.c.h.b16 %v1783
        %v1827 = vunpack.c.l.b16 %v1784
        %v1828 = vunpack.c.h.b16 %v1784
        %v1829 = vunpack.c.l.b16 %v1785
        %v1830 = vunpack.c.h.b16 %v1785
        %v1831 = vunpack.c.l.b16 %v1786
        %v1832 = vunpack.c.h.b16 %v1786
        %v1833 = vunpack.c.l.b16 %v1787
        %v1834 = vunpack.c.h.b16 %v1787
        %v1835 = vunpack.c.l.b16 %v1788
        %v1836 = vunpack.c.h.b16 %v1788
        %v1837 = vpack.c.b16 %v1807, %v1805
        %v1838 = vpack.c.b16 %v1808, %v1806
        %v1839 = vpack.c.b16 %v1811, %v1809
        %v1840 = vpack.c.b16 %v1812, %v1810
        %v1841 = vpack.c.b16 %v1815, %v1813
        %v1842 = vpack.c.b16 %v1816, %v1814
        %v1843 = vpack.c.b16 %v1819, %v1817
        %v1844 = vpack.c.b16 %v1820, %v1818
        %v1845 = vpack.c.b16 %v1823, %v1821
        %v1846 = vpack.c.b16 %v1824, %v1822
        %v1847 = vpack.c.b16 %v1827, %v1825
        %v1848 = vpack.c.b16 %v1828, %v1826
        %v1849 = vpack.c.b16 %v1831, %v1829
        %v1850 = vpack.c.b16 %v1832, %v1830
        %v1851 = vpack.c.b16 %v1835, %v1833
        %v1852 = vpack.c.b16 %v1836, %v1834
        %1869 = vmatprep.subr.bf16.mxu0 %v1852
        %1870 = vmatpush1.bf16.msra.mxu0 %v1851
        %1871 = vmatprep.subr.bf16.mxu0 %v1850
        %1872 = vmatpush1.bf16.msra.mxu0 %v1849
        %1873 = vmatprep.subr.bf16.mxu0 %v1848
        %1874 = vmatpush1.bf16.msra.mxu0 %v1847
        %1875 = vmatprep.subr.bf16.mxu0 %v1846
        %1876 = vmatpush1.bf16.msra.mxu0 %v1845
        %1877 = vmatprep.subr.bf16.mxu0 %v1844
        %1878 = vmatpush1.bf16.msra.mxu0 %v1843
        %1879 = vmatprep.subr.bf16.mxu0 %v1842
        %1880 = vmatpush1.bf16.msra.mxu0 %v1841
        %1881 = vmatprep.subr.bf16.mxu0 %v1840
        %1882 = vmatpush1.bf16.msra.mxu0 %v1839
        %1883 = vmatprep.subr.bf16.mxu0 %v1838
        %1884 = vmatpush1.bf16.msra.mxu0 %v1837
        %1885 = vmatprep.subr.bf16.mxu0 0
        %1886 = vmatpush2.bf16.msra.mxu0 0
        %1887 = vmatprep.subr.bf16.mxu0 0
        %1888 = vmatpush2.bf16.msra.mxu0 0
        %1889 = vmatprep.subr.bf16.mxu0 0
        %1890 = vmatpush2.bf16.msra.mxu0 0
        %1891 = vmatprep.subr.bf16.mxu0 0
        %1892 = vmatpush2.bf16.msra.mxu0 0
        %1893 = vmatprep.subr.bf16.mxu0 0
        %1894 = vmatpush2.bf16.msra.mxu0 0
        %1895 = vmatprep.subr.bf16.mxu0 0
        %1896 = vmatpush2.bf16.msra.mxu0 0
        %1897 = vmatprep.subr.bf16.mxu0 0
        %1898 = vmatpush2.bf16.msra.mxu0 0
        %1899 = vmatprep.subr.bf16.mxu0 0
        %1900 = vmatpush2.bf16.msra.mxu0 0
        %1901 = vmatprep.mubr.bf16.mxu0 0
        %1902 = vmatmul.mubr.bf16.gmra.mxu0 %v985
        %v1903 = vpop.f32.mrf.mxu0
        %v1904 = vadd.f32 0.0, %v1903
        %v1905 = vpop.f32.mrf.mxu0
        %v1906 = vadd.f32 0.0, %v1905
        %v1907 = vpop.f32.mrf.mxu0
        %v1908 = vadd.f32 0.0, %v1907
        %v1909 = vpop.f32.mrf.mxu0
        %v1910 = vadd.f32 0.0, %v1909
        %1911 = vmatprep.mubr.bf16.mxu0 0
        %1912 = vmatmul.mubr.bf16.gmra.mxu0 %v986
        %v1913 = vpop.f32.mrf.mxu0
        %v1914 = vadd.f32 0.0, %v1913
        %v1915 = vpop.f32.mrf.mxu0
        %v1916 = vadd.f32 0.0, %v1915
        %v1917 = vpop.f32.mrf.mxu0
        %v1918 = vadd.f32 0.0, %v1917
        %v1919 = vpop.f32.mrf.mxu0
        %v1920 = vadd.f32 0.0, %v1919
        %1921 = vmatprep.mubr.bf16.mxu0 0
        %1922 = vmatmul.mubr.bf16.gmra.mxu0 %v987
        %v1923 = vpop.f32.mrf.mxu0
        %v1924 = vadd.f32 0.0, %v1923
        %v1925 = vpop.f32.mrf.mxu0
        %v1926 = vadd.f32 0.0, %v1925
        %v1927 = vpop.f32.mrf.mxu0
        %v1928 = vadd.f32 0.0, %v1927
        %v1929 = vpop.f32.mrf.mxu0
        %v1930 = vadd.f32 0.0, %v1929
        %1931 = vmatprep.mubr.bf16.mxu0 0
        %1932 = vmatmul.mubr.bf16.gmra.mxu0 %v988
        %v1933 = vpop.f32.mrf.mxu0
        %v1934 = vadd.f32 0.0, %v1933
        %v1935 = vpop.f32.mrf.mxu0
        %v1936 = vadd.f32 0.0, %v1935
        %v1937 = vpop.f32.mrf.mxu0
        %v1938 = vadd.f32 0.0, %v1937
        %v1939 = vpop.f32.mrf.mxu0
        %v1940 = vadd.f32 0.0, %v1939
        %1941 = vmatprep.mubr.bf16.mxu0 0
        %1942 = vmatmul.mubr.bf16.gmra.mxu0 %v989
        %v1943 = vpop.f32.mrf.mxu0
        %v1944 = vadd.f32 0.0, %v1943
        %v1945 = vpop.f32.mrf.mxu0
        %v1946 = vadd.f32 0.0, %v1945
        %v1947 = vpop.f32.mrf.mxu0
        %v1948 = vadd.f32 0.0, %v1947
        %v1949 = vpop.f32.mrf.mxu0
        %v1950 = vadd.f32 0.0, %v1949
        %1951 = vmatprep.mubr.bf16.mxu0 0
        %1952 = vmatmul.mubr.bf16.gmra.mxu0 %v990
        %v1953 = vpop.f32.mrf.mxu0
        %v1954 = vadd.f32 0.0, %v1953
        %v1955 = vpop.f32.mrf.mxu0
        %v1956 = vadd.f32 0.0, %v1955
        %v1957 = vpop.f32.mrf.mxu0
        %v1958 = vadd.f32 0.0, %v1957
        %v1959 = vpop.f32.mrf.mxu0
        %v1960 = vadd.f32 0.0, %v1959
        %1961 = vmatprep.mubr.bf16.mxu0 0
        %1962 = vmatmul.mubr.bf16.gmra.mxu0 %v991
        %v1963 = vpop.f32.mrf.mxu0
        %v1964 = vadd.f32 0.0, %v1963
        %v1965 = vpop.f32.mrf.mxu0
        %v1966 = vadd.f32 0.0, %v1965
        %v1967 = vpop.f32.mrf.mxu0
        %v1968 = vadd.f32 0.0, %v1967
        %v1969 = vpop.f32.mrf.mxu0
        %v1970 = vadd.f32 0.0, %v1969
        %1971 = vmatprep.mubr.bf16.mxu0 0
        %1972 = vmatmul.mubr.bf16.gmra.mxu0 %v992
        %v1973 = vpop.f32.mrf.mxu0
        %v1974 = vadd.f32 0.0, %v1973
        %v1975 = vpop.f32.mrf.mxu0
        %v1976 = vadd.f32 0.0, %v1975
        %v1977 = vpop.f32.mrf.mxu0
        %v1978 = vadd.f32 0.0, %v1977
        %v1979 = vpop.f32.mrf.mxu0
        %v1980 = vadd.f32 0.0, %v1979
        %1981 = vmatprep.mubr.bf16.mxu0 0
        %1982 = vmatmul.mubr.bf16.gmra.mxu0 %v993
        %v1983 = vpop.f32.mrf.mxu0
        %v1984 = vadd.f32 0.0, %v1983
        %v1985 = vpop.f32.mrf.mxu0
        %v1986 = vadd.f32 0.0, %v1985
        %v1987 = vpop.f32.mrf.mxu0
        %v1988 = vadd.f32 0.0, %v1987
        %v1989 = vpop.f32.mrf.mxu0
        %v1990 = vadd.f32 0.0, %v1989
        %1991 = vmatprep.mubr.bf16.mxu0 0
        %1992 = vmatmul.mubr.bf16.gmra.mxu0 %v994
        %v1993 = vpop.f32.mrf.mxu0
        %v1994 = vadd.f32 0.0, %v1993
        %v1995 = vpop.f32.mrf.mxu0
        %v1996 = vadd.f32 0.0, %v1995
        %v1997 = vpop.f32.mrf.mxu0
        %v1998 = vadd.f32 0.0, %v1997
        %v1999 = vpop.f32.mrf.mxu0
        %v2000 = vadd.f32 0.0, %v1999
        %2001 = vmatprep.mubr.bf16.mxu0 0
        %2002 = vmatmul.mubr.bf16.gmra.mxu0 %v995
        %v2003 = vpop.f32.mrf.mxu0
        %v2004 = vadd.f32 0.0, %v2003
        %v2005 = vpop.f32.mrf.mxu0
        %v2006 = vadd.f32 0.0, %v2005
        %v2007 = vpop.f32.mrf.mxu0
        %v2008 = vadd.f32 0.0, %v2007
        %v2009 = vpop.f32.mrf.mxu0
        %v2010 = vadd.f32 0.0, %v2009
        %2011 = vmatprep.mubr.bf16.mxu0 0
        %2012 = vmatmul.mubr.bf16.gmra.mxu0 %v996
        %v2013 = vpop.f32.mrf.mxu0
        %v2014 = vadd.f32 0.0, %v2013
        %v2015 = vpop.f32.mrf.mxu0
        %v2016 = vadd.f32 0.0, %v2015
        %v2017 = vpop.f32.mrf.mxu0
        %v2018 = vadd.f32 0.0, %v2017
        %v2019 = vpop.f32.mrf.mxu0
        %v2020 = vadd.f32 0.0, %v2019
        %2021 = vmatprep.mubr.bf16.mxu0 0
        %2022 = vmatmul.mubr.bf16.gmra.mxu0 %v997
        %v2023 = vpop.f32.mrf.mxu0
        %v2024 = vadd.f32 0.0, %v2023
        %v2025 = vpop.f32.mrf.mxu0
        %v2026 = vadd.f32 0.0, %v2025
        %v2027 = vpop.f32.mrf.mxu0
        %v2028 = vadd.f32 0.0, %v2027
        %v2029 = vpop.f32.mrf.mxu0
        %v2030 = vadd.f32 0.0, %v2029
        %2031 = vmatprep.mubr.bf16.mxu0 0
        %2032 = vmatmul.mubr.bf16.gmra.mxu0 %v998
        %v2033 = vpop.f32.mrf.mxu0
        %v2034 = vadd.f32 0.0, %v2033
        %v2035 = vpop.f32.mrf.mxu0
        %v2036 = vadd.f32 0.0, %v2035
        %v2037 = vpop.f32.mrf.mxu0
        %v2038 = vadd.f32 0.0, %v2037
        %v2039 = vpop.f32.mrf.mxu0
        %v2040 = vadd.f32 0.0, %v2039
        %2041 = vmatprep.mubr.bf16.mxu0 0
        %2042 = vmatmul.mubr.bf16.gmra.mxu0 %v999
        %v2043 = vpop.f32.mrf.mxu0
        %v2044 = vadd.f32 0.0, %v2043
        %v2045 = vpop.f32.mrf.mxu0
        %v2046 = vadd.f32 0.0, %v2045
        %v2047 = vpop.f32.mrf.mxu0
        %v2048 = vadd.f32 0.0, %v2047
        %v2049 = vpop.f32.mrf.mxu0
        %v2050 = vadd.f32 0.0, %v2049
        %2051 = vmatprep.mubr.bf16.mxu0 0
        %2052 = vmatmul.mubr.bf16.gmra.mxu0 %v1000
        %v2053 = vpop.f32.mrf.mxu0
        %v2054 = vadd.f32 0.0, %v2053
        %v2055 = vpop.f32.mrf.mxu0
        %v2056 = vadd.f32 0.0, %v2055
        %v2057 = vpop.f32.mrf.mxu0
        %v2058 = vadd.f32 0.0, %v2057
        %v2059 = vpop.f32.mrf.mxu0
        %v2060 = vadd.f32 0.0, %v2059
        %2061 = vdwg.mxu0
        %v2062 = vmax.f32 %v1904, %v1914
        %v2063 = vmax.f32 %v1908, %v1918
        %v2064 = vmax.f32 %v2062, %v1924
        %v2065 = vmax.f32 %v2063, %v1928
        %v2066 = vmax.f32 %v2064, %v1934
        %v2067 = vmax.f32 %v2065, %v1938
        %v2068 = vmax.f32 %v2066, %v1944
        %v2069 = vmax.f32 %v2067, %v1948
        %v2070 = vmax.f32 %v2068, %v1954
        %v2071 = vmax.f32 %v2069, %v1958
        %v2072 = vmax.f32 %v2070, %v1964
        %v2073 = vmax.f32 %v2071, %v1968
        %v2074 = vmax.f32 %v2072, %v1974
        %v2075 = vmax.f32 %v2073, %v1978
        %v2076 = vmax.f32 %v2074, %v1984
        %v2077 = vmax.f32 %v2075, %v1988
        %v2078 = vmax.f32 %v2076, %v1994
        %v2079 = vmax.f32 %v2077, %v1998
        %v2080 = vmax.f32 %v2078, %v2004
        %v2081 = vmax.f32 %v2079, %v2008
        %v2082 = vmax.f32 %v2080, %v2014
        %v2083 = vmax.f32 %v2081, %v2018
        %v2084 = vmax.f32 %v2082, %v2024
        %v2085 = vmax.f32 %v2083, %v2028
        %v2086 = vmax.f32 %v2084, %v2034
        %v2087 = vmax.f32 %v2085, %v2038
        %v2088 = vmax.f32 %v2086, %v2044
        %v2089 = vmax.f32 %v2087, %v2048
        %v2090 = vmax.f32 %v2088, %v2054
        %v2091 = vmax.f32 %v2089, %v2058
        %v2092 = vmax.f32 %v2090, %v2091
        %v2093 = vrot.slane %v2092, 4
        %v2094 = vmax.f32 %v2092, %v2093
        %v2095 = vrot.slane %v2094, 2
        %v2096 = vmax.f32 %v2094, %v2095
        %v2097 = vrot.slane %v2096, 1
        %v2098 = vmax.f32 %v2096, %v2097
        %v2099 = vmax.f32 %v1906, %v1916
        %v2100 = vmax.f32 %v1910, %v1920
        %v2101 = vmax.f32 %v2099, %v1926
        %v2102 = vmax.f32 %v2100, %v1930
        %v2103 = vmax.f32 %v2101, %v1936
        %v2104 = vmax.f32 %v2102, %v1940
        %v2105 = vmax.f32 %v2103, %v1946
        %v2106 = vmax.f32 %v2104, %v1950
        %v2107 = vmax.f32 %v2105, %v1956
        %v2108 = vmax.f32 %v2106, %v1960
        %v2109 = vmax.f32 %v2107, %v1966
        %v2110 = vmax.f32 %v2108, %v1970
        %v2111 = vmax.f32 %v2109, %v1976
        %v2112 = vmax.f32 %v2110, %v1980
        %v2113 = vmax.f32 %v2111, %v1986
        %v2114 = vmax.f32 %v2112, %v1990
        %v2115 = vmax.f32 %v2113, %v1996
        %v2116 = vmax.f32 %v2114, %v2000
        %v2117 = vmax.f32 %v2115, %v2006
        %v2118 = vmax.f32 %v2116, %v2010
        %v2119 = vmax.f32 %v2117, %v2016
        %v2120 = vmax.f32 %v2118, %v2020
        %v2121 = vmax.f32 %v2119, %v2026
        %v2122 = vmax.f32 %v2120, %v2030
        %v2123 = vmax.f32 %v2121, %v2036
        %v2124 = vmax.f32 %v2122, %v2040
        %v2125 = vmax.f32 %v2123, %v2046
        %v2126 = vmax.f32 %v2124, %v2050
        %v2127 = vmax.f32 %v2125, %v2056
        %v2128 = vmax.f32 %v2126, %v2060
        %v2129 = vmax.f32 %v2127, %v2128
        %v2130 = vrot.slane %v2129, 4
        %v2131 = vmax.f32 %v2129, %v2130
        %v2132 = vrot.slane %v2131, 2
        %v2133 = vmax.f32 %v2131, %v2132
        %v2134 = vrot.slane %v2133, 1
        %v2135 = vmax.f32 %v2133, %v2134
        %v2136 = vld [vmem:[%s305 + $0x4] sm:$0x3]
        %v2139 = vcombine.low %v2098, %v2135
        %v2141 = vunpack.c.l.s4 1966171168
        %v2142 = vunpack.c.0.s8 %v2141
        %v2143 = vlaneseq
        %v2144 = vshrl.u32 %v2143, 7
        %v2145 = vsub.s32 %v2142, %v2144
        %v2146 = vrot.slane %v2139, %v2145
        %v2148 = vunpack.c.l.s4 1966171168
        %v2149 = vunpack.c.0.s8 %v2148
        %v2150 = vlaneseq
        %v2151 = vshrl.u32 %v2150, 7
        %v2152 = vsub.s32 %v2149, %v2151
        %v2153 = vrot.slane %v2146, %v2152
        %v2155 = vmax.f32 %v2136, %v2153
        %2156 = vst.msk [vmem:[%s305 + $0x4] sm:$0x3] %vm1387, %v2155
        %v2157 = vld [vmem:[#allocation4 + $0x18] sm:$0xff]
        %v2158 = vld [vmem:[#allocation4 + $0x38] sm:$0xff]
        %v2159 = vld [vmem:[#allocation4 + $0x58] sm:$0xff]
        %v2160 = vld [vmem:[#allocation4 + $0x78] sm:$0xff]
        %v2161 = vld [vmem:[#allocation4 + $0x98] sm:$0xff]
        %v2162 = vld [vmem:[#allocation4 + $0xb8] sm:$0xff]
        %v2163 = vld [vmem:[#allocation4 + $0xd8] sm:$0xff]
        %v2164 = vld [vmem:[#allocation4 + $0xf8] sm:$0xff]
        %v2165 = vld [vmem:[#allocation4 + $0x118] sm:$0xff]
        %v2166 = vld [vmem:[#allocation4 + $0x138] sm:$0xff]
        %v2167 = vld [vmem:[#allocation4 + $0x158] sm:$0xff]
        %v2168 = vld [vmem:[#allocation4 + $0x178] sm:$0xff]
        %v2169 = vld [vmem:[#allocation4 + $0x198] sm:$0xff]
        %v2170 = vld [vmem:[#allocation4 + $0x1b8] sm:$0xff]
        %v2171 = vld [vmem:[#allocation4 + $0x1d8] sm:$0xff]
        %v2172 = vld [vmem:[#allocation4 + $0x1f8] sm:$0xff]
        %v2189 = vunpack.c.l.b16 %v2157
        %v2190 = vunpack.c.h.b16 %v2157
        %v2191 = vunpack.c.l.b16 %v2158
        %v2192 = vunpack.c.h.b16 %v2158
        %v2193 = vunpack.c.l.b16 %v2159
        %v2194 = vunpack.c.h.b16 %v2159
        %v2195 = vunpack.c.l.b16 %v2160
        %v2196 = vunpack.c.h.b16 %v2160
        %v2197 = vunpack.c.l.b16 %v2161
        %v2198 = vunpack.c.h.b16 %v2161
        %v2199 = vunpack.c.l.b16 %v2162
        %v2200 = vunpack.c.h.b16 %v2162
        %v2201 = vunpack.c.l.b16 %v2163
        %v2202 = vunpack.c.h.b16 %v2163
        %v2203 = vunpack.c.l.b16 %v2164
        %v2204 = vunpack.c.h.b16 %v2164
        %v2205 = vunpack.c.l.b16 %v2165
        %v2206 = vunpack.c.h.b16 %v2165
        %v2207 = vunpack.c.l.b16 %v2166
        %v2208 = vunpack.c.h.b16 %v2166
        %v2209 = vunpack.c.l.b16 %v2167
        %v2210 = vunpack.c.h.b16 %v2167
        %v2211 = vunpack.c.l.b16 %v2168
        %v2212 = vunpack.c.h.b16 %v2168
        %v2213 = vunpack.c.l.b16 %v2169
        %v2214 = vunpack.c.h.b16 %v2169
        %v2215 = vunpack.c.l.b16 %v2170
        %v2216 = vunpack.c.h.b16 %v2170
        %v2217 = vunpack.c.l.b16 %v2171
        %v2218 = vunpack.c.h.b16 %v2171
        %v2219 = vunpack.c.l.b16 %v2172
        %v2220 = vunpack.c.h.b16 %v2172
        %v2221 = vpack.c.b16 %v2191, %v2189
        %v2222 = vpack.c.b16 %v2192, %v2190
        %v2223 = vpack.c.b16 %v2195, %v2193
        %v2224 = vpack.c.b16 %v2196, %v2194
        %v2225 = vpack.c.b16 %v2199, %v2197
        %v2226 = vpack.c.b16 %v2200, %v2198
        %v2227 = vpack.c.b16 %v2203, %v2201
        %v2228 = vpack.c.b16 %v2204, %v2202
        %v2229 = vpack.c.b16 %v2207, %v2205
        %v2230 = vpack.c.b16 %v2208, %v2206
        %v2231 = vpack.c.b16 %v2211, %v2209
        %v2232 = vpack.c.b16 %v2212, %v2210
        %v2233 = vpack.c.b16 %v2215, %v2213
        %v2234 = vpack.c.b16 %v2216, %v2214
        %v2235 = vpack.c.b16 %v2219, %v2217
        %v2236 = vpack.c.b16 %v2220, %v2218
        %2253 = vmatprep.subr.bf16.mxu0 %v2236
        %2254 = vmatpush1.bf16.msra.mxu0 %v2235
        %2255 = vmatprep.subr.bf16.mxu0 %v2234
        %2256 = vmatpush1.bf16.msra.mxu0 %v2233
        %2257 = vmatprep.subr.bf16.mxu0 %v2232
        %2258 = vmatpush1.bf16.msra.mxu0 %v2231
        %2259 = vmatprep.subr.bf16.mxu0 %v2230
        %2260 = vmatpush1.bf16.msra.mxu0 %v2229
        %2261 = vmatprep.subr.bf16.mxu0 %v2228
        %2262 = vmatpush1.bf16.msra.mxu0 %v2227
        %2263 = vmatprep.subr.bf16.mxu0 %v2226
        %2264 = vmatpush1.bf16.msra.mxu0 %v2225
        %2265 = vmatprep.subr.bf16.mxu0 %v2224
        %2266 = vmatpush1.bf16.msra.mxu0 %v2223
        %2267 = vmatprep.subr.bf16.mxu0 %v2222
        %2268 = vmatpush1.bf16.msra.mxu0 %v2221
        %2269 = vmatprep.subr.bf16.mxu0 0
        %2270 = vmatpush2.bf16.msra.mxu0 0
        %2271 = vmatprep.subr.bf16.mxu0 0
        %2272 = vmatpush2.bf16.msra.mxu0 0
        %2273 = vmatprep.subr.bf16.mxu0 0
        %2274 = vmatpush2.bf16.msra.mxu0 0
        %2275 = vmatprep.subr.bf16.mxu0 0
        %2276 = vmatpush2.bf16.msra.mxu0 0
        %2277 = vmatprep.subr.bf16.mxu0 0
        %2278 = vmatpush2.bf16.msra.mxu0 0
        %2279 = vmatprep.subr.bf16.mxu0 0
        %2280 = vmatpush2.bf16.msra.mxu0 0
        %2281 = vmatprep.subr.bf16.mxu0 0
        %2282 = vmatpush2.bf16.msra.mxu0 0
        %2283 = vmatprep.subr.bf16.mxu0 0
        %2284 = vmatpush2.bf16.msra.mxu0 0
        %2285 = vmatprep.mubr.bf16.mxu0 0
        %2286 = vmatmul.mubr.bf16.gmra.mxu0 %v985
        %v2287 = vpop.f32.mrf.mxu0
        %v2288 = vadd.f32 0.0, %v2287
        %v2289 = vpop.f32.mrf.mxu0
        %v2290 = vadd.f32 0.0, %v2289
        %v2291 = vpop.f32.mrf.mxu0
        %v2292 = vadd.f32 0.0, %v2291
        %v2293 = vpop.f32.mrf.mxu0
        %v2294 = vadd.f32 0.0, %v2293
        %2295 = vmatprep.mubr.bf16.mxu0 0
        %2296 = vmatmul.mubr.bf16.gmra.mxu0 %v986
        %v2297 = vpop.f32.mrf.mxu0
        %v2298 = vadd.f32 0.0, %v2297
        %v2299 = vpop.f32.mrf.mxu0
        %v2300 = vadd.f32 0.0, %v2299
        %v2301 = vpop.f32.mrf.mxu0
        %v2302 = vadd.f32 0.0, %v2301
        %v2303 = vpop.f32.mrf.mxu0
        %v2304 = vadd.f32 0.0, %v2303
        %2305 = vmatprep.mubr.bf16.mxu0 0
        %2306 = vmatmul.mubr.bf16.gmra.mxu0 %v987
        %v2307 = vpop.f32.mrf.mxu0
        %v2308 = vadd.f32 0.0, %v2307
        %v2309 = vpop.f32.mrf.mxu0
        %v2310 = vadd.f32 0.0, %v2309
        %v2311 = vpop.f32.mrf.mxu0
        %v2312 = vadd.f32 0.0, %v2311
        %v2313 = vpop.f32.mrf.mxu0
        %v2314 = vadd.f32 0.0, %v2313
        %2315 = vmatprep.mubr.bf16.mxu0 0
        %2316 = vmatmul.mubr.bf16.gmra.mxu0 %v988
        %v2317 = vpop.f32.mrf.mxu0
        %v2318 = vadd.f32 0.0, %v2317
        %v2319 = vpop.f32.mrf.mxu0
        %v2320 = vadd.f32 0.0, %v2319
        %v2321 = vpop.f32.mrf.mxu0
        %v2322 = vadd.f32 0.0, %v2321
        %v2323 = vpop.f32.mrf.mxu0
        %v2324 = vadd.f32 0.0, %v2323
        %2325 = vmatprep.mubr.bf16.mxu0 0
        %2326 = vmatmul.mubr.bf16.gmra.mxu0 %v989
        %v2327 = vpop.f32.mrf.mxu0
        %v2328 = vadd.f32 0.0, %v2327
        %v2329 = vpop.f32.mrf.mxu0
        %v2330 = vadd.f32 0.0, %v2329
        %v2331 = vpop.f32.mrf.mxu0
        %v2332 = vadd.f32 0.0, %v2331
        %v2333 = vpop.f32.mrf.mxu0
        %v2334 = vadd.f32 0.0, %v2333
        %2335 = vmatprep.mubr.bf16.mxu0 0
        %2336 = vmatmul.mubr.bf16.gmra.mxu0 %v990
        %v2337 = vpop.f32.mrf.mxu0
        %v2338 = vadd.f32 0.0, %v2337
        %v2339 = vpop.f32.mrf.mxu0
        %v2340 = vadd.f32 0.0, %v2339
        %v2341 = vpop.f32.mrf.mxu0
        %v2342 = vadd.f32 0.0, %v2341
        %v2343 = vpop.f32.mrf.mxu0
        %v2344 = vadd.f32 0.0, %v2343
        %2345 = vmatprep.mubr.bf16.mxu0 0
        %2346 = vmatmul.mubr.bf16.gmra.mxu0 %v991
        %v2347 = vpop.f32.mrf.mxu0
        %v2348 = vadd.f32 0.0, %v2347
        %v2349 = vpop.f32.mrf.mxu0
        %v2350 = vadd.f32 0.0, %v2349
        %v2351 = vpop.f32.mrf.mxu0
        %v2352 = vadd.f32 0.0, %v2351
        %v2353 = vpop.f32.mrf.mxu0
        %v2354 = vadd.f32 0.0, %v2353
        %2355 = vmatprep.mubr.bf16.mxu0 0
        %2356 = vmatmul.mubr.bf16.gmra.mxu0 %v992
        %v2357 = vpop.f32.mrf.mxu0
        %v2358 = vadd.f32 0.0, %v2357
        %v2359 = vpop.f32.mrf.mxu0
        %v2360 = vadd.f32 0.0, %v2359
        %v2361 = vpop.f32.mrf.mxu0
        %v2362 = vadd.f32 0.0, %v2361
        %v2363 = vpop.f32.mrf.mxu0
        %v2364 = vadd.f32 0.0, %v2363
        %2365 = vmatprep.mubr.bf16.mxu0 0
        %2366 = vmatmul.mubr.bf16.gmra.mxu0 %v993
        %v2367 = vpop.f32.mrf.mxu0
        %v2368 = vadd.f32 0.0, %v2367
        %v2369 = vpop.f32.mrf.mxu0
        %v2370 = vadd.f32 0.0, %v2369
        %v2371 = vpop.f32.mrf.mxu0
        %v2372 = vadd.f32 0.0, %v2371
        %v2373 = vpop.f32.mrf.mxu0
        %v2374 = vadd.f32 0.0, %v2373
        %2375 = vmatprep.mubr.bf16.mxu0 0
        %2376 = vmatmul.mubr.bf16.gmra.mxu0 %v994
        %v2377 = vpop.f32.mrf.mxu0
        %v2378 = vadd.f32 0.0, %v2377
        %v2379 = vpop.f32.mrf.mxu0
        %v2380 = vadd.f32 0.0, %v2379
        %v2381 = vpop.f32.mrf.mxu0
        %v2382 = vadd.f32 0.0, %v2381
        %v2383 = vpop.f32.mrf.mxu0
        %v2384 = vadd.f32 0.0, %v2383
        %2385 = vmatprep.mubr.bf16.mxu0 0
        %2386 = vmatmul.mubr.bf16.gmra.mxu0 %v995
        %v2387 = vpop.f32.mrf.mxu0
        %v2388 = vadd.f32 0.0, %v2387
        %v2389 = vpop.f32.mrf.mxu0
        %v2390 = vadd.f32 0.0, %v2389
        %v2391 = vpop.f32.mrf.mxu0
        %v2392 = vadd.f32 0.0, %v2391
        %v2393 = vpop.f32.mrf.mxu0
        %v2394 = vadd.f32 0.0, %v2393
        %2395 = vmatprep.mubr.bf16.mxu0 0
        %2396 = vmatmul.mubr.bf16.gmra.mxu0 %v996
        %v2397 = vpop.f32.mrf.mxu0
        %v2398 = vadd.f32 0.0, %v2397
        %v2399 = vpop.f32.mrf.mxu0
        %v2400 = vadd.f32 0.0, %v2399
        %v2401 = vpop.f32.mrf.mxu0
        %v2402 = vadd.f32 0.0, %v2401
        %v2403 = vpop.f32.mrf.mxu0
        %v2404 = vadd.f32 0.0, %v2403
        %2405 = vmatprep.mubr.bf16.mxu0 0
        %2406 = vmatmul.mubr.bf16.gmra.mxu0 %v997
        %v2407 = vpop.f32.mrf.mxu0
        %v2408 = vadd.f32 0.0, %v2407
        %v2409 = vpop.f32.mrf.mxu0
        %v2410 = vadd.f32 0.0, %v2409
        %v2411 = vpop.f32.mrf.mxu0
        %v2412 = vadd.f32 0.0, %v2411
        %v2413 = vpop.f32.mrf.mxu0
        %v2414 = vadd.f32 0.0, %v2413
        %2415 = vmatprep.mubr.bf16.mxu0 0
        %2416 = vmatmul.mubr.bf16.gmra.mxu0 %v998
        %v2417 = vpop.f32.mrf.mxu0
        %v2418 = vadd.f32 0.0, %v2417
        %v2419 = vpop.f32.mrf.mxu0
        %v2420 = vadd.f32 0.0, %v2419
        %v2421 = vpop.f32.mrf.mxu0
        %v2422 = vadd.f32 0.0, %v2421
        %v2423 = vpop.f32.mrf.mxu0
        %v2424 = vadd.f32 0.0, %v2423
        %2425 = vmatprep.mubr.bf16.mxu0 0
        %2426 = vmatmul.mubr.bf16.gmra.mxu0 %v999
        %v2427 = vpop.f32.mrf.mxu0
        %v2428 = vadd.f32 0.0, %v2427
        %v2429 = vpop.f32.mrf.mxu0
        %v2430 = vadd.f32 0.0, %v2429
        %v2431 = vpop.f32.mrf.mxu0
        %v2432 = vadd.f32 0.0, %v2431
        %v2433 = vpop.f32.mrf.mxu0
        %v2434 = vadd.f32 0.0, %v2433
        %2435 = vmatprep.mubr.bf16.mxu0 0
        %2436 = vmatmul.mubr.bf16.gmra.mxu0 %v1000
        %v2437 = vpop.f32.mrf.mxu0
        %v2438 = vadd.f32 0.0, %v2437
        %v2439 = vpop.f32.mrf.mxu0
        %v2440 = vadd.f32 0.0, %v2439
        %v2441 = vpop.f32.mrf.mxu0
        %v2442 = vadd.f32 0.0, %v2441
        %v2443 = vpop.f32.mrf.mxu0
        %v2444 = vadd.f32 0.0, %v2443
        %2445 = vdwg.mxu0
        %v2446 = vmax.f32 %v2288, %v2298
        %v2447 = vmax.f32 %v2292, %v2302
        %v2448 = vmax.f32 %v2446, %v2308
        %v2449 = vmax.f32 %v2447, %v2312
        %v2450 = vmax.f32 %v2448, %v2318
        %v2451 = vmax.f32 %v2449, %v2322
        %v2452 = vmax.f32 %v2450, %v2328
        %v2453 = vmax.f32 %v2451, %v2332
        %v2454 = vmax.f32 %v2452, %v2338
        %v2455 = vmax.f32 %v2453, %v2342
        %v2456 = vmax.f32 %v2454, %v2348
        %v2457 = vmax.f32 %v2455, %v2352
        %v2458 = vmax.f32 %v2456, %v2358
        %v2459 = vmax.f32 %v2457, %v2362
        %v2460 = vmax.f32 %v2458, %v2368
        %v2461 = vmax.f32 %v2459, %v2372
        %v2462 = vmax.f32 %v2460, %v2378
        %v2463 = vmax.f32 %v2461, %v2382
        %v2464 = vmax.f32 %v2462, %v2388
        %v2465 = vmax.f32 %v2463, %v2392
        %v2466 = vmax.f32 %v2464, %v2398
        %v2467 = vmax.f32 %v2465, %v2402
        %v2468 = vmax.f32 %v2466, %v2408
        %v2469 = vmax.f32 %v2467, %v2412
        %v2470 = vmax.f32 %v2468, %v2418
        %v2471 = vmax.f32 %v2469, %v2422
        %v2472 = vmax.f32 %v2470, %v2428
        %v2473 = vmax.f32 %v2471, %v2432
        %v2474 = vmax.f32 %v2472, %v2438
        %v2475 = vmax.f32 %v2473, %v2442
        %v2476 = vmax.f32 %v2474, %v2475
        %v2477 = vrot.slane %v2476, 4
        %v2478 = vmax.f32 %v2476, %v2477
        %v2479 = vrot.slane %v2478, 2
        %v2480 = vmax.f32 %v2478, %v2479
        %v2481 = vrot.slane %v2480, 1
        %v2482 = vmax.f32 %v2480, %v2481
        %v2483 = vmax.f32 %v2290, %v2300
        %v2484 = vmax.f32 %v2294, %v2304
        %v2485 = vmax.f32 %v2483, %v2310
        %v2486 = vmax.f32 %v2484, %v2314
        %v2487 = vmax.f32 %v2485, %v2320
        %v2488 = vmax.f32 %v2486, %v2324
        %v2489 = vmax.f32 %v2487, %v2330
        %v2490 = vmax.f32 %v2488, %v2334
        %v2491 = vmax.f32 %v2489, %v2340
        %v2492 = vmax.f32 %v2490, %v2344
        %v2493 = vmax.f32 %v2491, %v2350
        %v2494 = vmax.f32 %v2492, %v2354
        %v2495 = vmax.f32 %v2493, %v2360
        %v2496 = vmax.f32 %v2494, %v2364
        %v2497 = vmax.f32 %v2495, %v2370
        %v2498 = vmax.f32 %v2496, %v2374
        %v2499 = vmax.f32 %v2497, %v2380
        %v2500 = vmax.f32 %v2498, %v2384
        %v2501 = vmax.f32 %v2499, %v2390
        %v2502 = vmax.f32 %v2500, %v2394
        %v2503 = vmax.f32 %v2501, %v2400
        %v2504 = vmax.f32 %v2502, %v2404
        %v2505 = vmax.f32 %v2503, %v2410
        %v2506 = vmax.f32 %v2504, %v2414
        %v2507 = vmax.f32 %v2505, %v2420
        %v2508 = vmax.f32 %v2506, %v2424
        %v2509 = vmax.f32 %v2507, %v2430
        %v2510 = vmax.f32 %v2508, %v2434
        %v2511 = vmax.f32 %v2509, %v2440
        %v2512 = vmax.f32 %v2510, %v2444
        %v2513 = vmax.f32 %v2511, %v2512
        %v2514 = vrot.slane %v2513, 4
        %v2515 = vmax.f32 %v2513, %v2514
        %v2516 = vrot.slane %v2515, 2
        %v2517 = vmax.f32 %v2515, %v2516
        %v2518 = vrot.slane %v2517, 1
        %v2519 = vmax.f32 %v2517, %v2518
        %v2520 = vld [vmem:[%s305 + $0x6] sm:$0x3]
        %v2523 = vcombine.low %v2482, %v2519
        %v2525 = vunpack.c.l.s4 1966171168
        %v2526 = vunpack.c.0.s8 %v2525
        %v2527 = vlaneseq
        %v2528 = vshrl.u32 %v2527, 7
        %v2529 = vsub.s32 %v2526, %v2528
        %v2530 = vrot.slane %v2523, %v2529
        %v2532 = vunpack.c.l.s4 1966171168
        %v2533 = vunpack.c.0.s8 %v2532
        %v2534 = vlaneseq
        %v2535 = vshrl.u32 %v2534, 7
        %v2536 = vsub.s32 %v2533, %v2535
        %v2537 = vrot.slane %v2530, %v2536
        %v2539 = vmax.f32 %v2520, %v2537
        %2540 = vst.msk [vmem:[%s305 + $0x6] sm:$0x3] %vm1387, %v2539
        %p2541 = scmp.lt.s32.totalorder %s23, 1
        %s2542 = scalar_select %p2541, %s23, 1
        %s2543 = smul.addr %s2542, 8
        %s2544 = scalar_lea.vmem %s6, %s2543
        // Predicated region
        $region57: #{tnet_forward.1} parent=43 // pred_check
          %p2545 = pneg %p182
        $region58: #{tnet_forward.1} parent=43 // pred_check_branch
          %2547 = sbr.rel (%p2545) target = $region60
        $region59: #{tnet_forward.1} parent=43 // pred_region
          _
        $region60: #{tnet_forward.1} parent=43 // pred_fallthru
          _
      $region44: #{tnet_forward.1} parent=5 // pred_fallthru
        _
      %p2548 = scmp.le.s32.totalorder 2, %s14
      // Predicated region
      $region61: #{tnet_forward.1} parent=5 // pred_check
        %p2549 = pneg %p2548
      $region62: #{tnet_forward.1} parent=5 // pred_check_branch
        %2551 = sbr.rel (%p2549) target = $region64
      $region63: #{tnet_forward.1} parent=5 // pred_region
        %s2552 = ssub.s32 %s14, 2
        // Predicated region
        $region65: #{tnet_forward.1} parent=63 // pred_check
          %p2553 = pneg %p188
        $region66: #{tnet_forward.1} parent=63 // pred_check_branch
          %2555 = sbr.rel (%p2553) target = $region68
        $region67: #{tnet_forward.1} parent=63 // pred_region
          %p2556 = scmp.lt.s32.totalorder %s25, 1
          %s2557 = scalar_select %p2556, %s25, 1
          %s2558 = smul.addr %s2557, 8
          %s2559 = scalar_lea.vmem %s6, %s2558
        $region68: #{tnet_forward.1} parent=63 // pred_fallthru
          _
      $region64: #{tnet_forward.1} parent=5 // pred_fallthru
        _
    $region6: #{tnet_forward.1} parent=1 // loop_footer
      %s18 = sadd.s32 1, %s14
    $region7: #{tnet_forward.1} parent=1 // loop_footer_branch
      %13 = sbr.rel target = $region3
    $region8: #{tnet_forward.1} parent=1 // loop_exit
      _
    %2560 = vsyncpa [#allocation3], 1
    %s2561 = scalar_lea.sflag [#allocation3], 1
    %2562 = vsyncpa %s2561, 1
    %2563 = vsyncpa [#allocation5], 1

</llo_original>
